<compile_context>
chip_gen: v5e
topology: v5e:2x2
jax: 0.10.0
libtpu: 0.0.40
codegen_flags: <defaults>
</compile_context>

<pallas_src>
import jax
import jax.numpy as jnp
import numpy as np
from jax import lax
from jax.experimental import pallas as pl
from jax.experimental.pallas import tpu as pltpu


def _round_up(x, m):
    return ((x + m - 1) // m) * m


# ----------------------------- Pallas kernel ------------------------------


def _seq2seq_kernel(enc_ids_ref, dec_ids_ref,
                    enc_emb_ref, enc_wxh_ref, enc_whh_ref, enc_bh_ref,
                    dec_emb_ref, dec_wxe_ref, dec_wxc_ref, dec_whh_ref, dec_bh_ref,
                    who_ref, bo_ref,
                    logits_ref, hfinal_ref,
                    hs_ref):
    """Fused embedding-gather -> encoder RNN -> decoder RNN -> batched vocab head."""
    V = enc_emb_ref.shape[0]
    H = enc_whh_ref.shape[0]
    B = hfinal_ref.shape[0]
    T_enc = enc_ids_ref.shape[0] // B
    T_dec = dec_ids_ref.shape[0] // B

    def _one_hot(ids_2d):
        # ids_2d: (N, 1) int32 (time-major flatten)  ->  (N, V) f32 one-hot.
        n = ids_2d.shape[0]
        col = lax.broadcasted_iota(jnp.int32, (n, V), 1)
        return (col == ids_2d).astype(jnp.float32)

    # ---- hoisted input projections (embedding gather fused via one-hot @ MXU).
    # enc: x_t @ Wxh == one_hot(id_t) @ (emb @ Wxh);  bias folded in once.
    enc_tab = jnp.dot(enc_emb_ref[...], enc_wxh_ref[...],
                      preferred_element_type=jnp.float32)          # (V, H)
    xe_proj = (jnp.dot(_one_hot(enc_ids_ref[...]), enc_tab,
                       preferred_element_type=jnp.float32)
               + enc_bh_ref[...])                                   # (T_enc*B, H)

    dec_tab = jnp.dot(dec_emb_ref[...], dec_wxe_ref[...],
                      preferred_element_type=jnp.float32)          # (V, H)
    xd_proj = jnp.dot(_one_hot(dec_ids_ref[...]), dec_tab,
                      preferred_element_type=jnp.float32)          # (T_dec*B, H)

    enc_whh = enc_whh_ref[...]
    dec_whh = dec_whh_ref[...]

    # ---- encoder recurrence: one dependent MXU push + tanh per step.
    h = jnp.zeros((B, H), jnp.float32)
    for t in range(T_enc):
        h = jnp.tanh(xe_proj[t * B:(t + 1) * B, :]
                     + jnp.dot(h, enc_whh, preferred_element_type=jnp.float32))

    ctx = h  # encoder final hidden == decoder context == decoder init state

    # ---- loop-invariant decoder term: ctx @ W_xc + b_h (constant over t).
    ctx_term = (jnp.dot(ctx, dec_wxc_ref[...], preferred_element_type=jnp.float32)
                + dec_bh_ref[...])                                  # (B, H)

    # ---- decoder recurrence; hidden states accumulated in a VMEM scratch.
    hd = ctx
    for t in range(T_dec):
        hd = jnp.tanh(xd_proj[t * B:(t + 1) * B, :] + ctx_term
                      + jnp.dot(hd, dec_whh, preferred_element_type=jnp.float32))
        hs_ref[t * B:(t + 1) * B, :] = hd                           # static store

    # ---- batched vocab head: single (T_dec*B, H) @ (H, Vp) matmul, lane-dense.
    logits_all = (jnp.dot(hs_ref[...], who_ref[...],
                          preferred_element_type=jnp.float32)
                  + bo_ref[...])                                    # (T_dec*B, Vp)

    # Write directly in the consumer layout (B, T_dec, Vp): per-t lane-dense
    # stores, so no post-kernel transpose is needed.
    for t in range(T_dec):
        logits_ref[:, t, :] = logits_all[t * B:(t + 1) * B, :]

    hfinal_ref[...] = hd


# ----------------------------- wrapper -------------------------------------


def prepare_params(params):
    """One-time (init-time) prep: pad the vocab head to a lane-dense width."""
    V = params["dec_who"].shape[1]
    Vp = _round_up(V, 128)
    p = dict(params)
    p["dec_who_p"] = jnp.pad(params["dec_who"], ((0, 0), (0, Vp - V)))
    p["dec_bo_p"] = jnp.pad(params["dec_bo"], ((0, 0), (0, Vp - V)))
    return p


@jax.jit
def encoder_decoder_forward(params, enc_X, dec_X):
    """enc_X, dec_X: (B, T) int32 -> (logits (B, T_dec, V), final state (B, H))."""
    B, T_enc = enc_X.shape
    _, T_dec = dec_X.shape
    H = params["enc_whh"].shape[0]
    V = params["dec_who"].shape[1]
    Vp = params["dec_who_p"].shape[1]

    # Time-major flattened ids (tiny int32 reshape; keeps all in-kernel slices
    # contiguous & static). Shape (T*B, 1) so the kernel's one-hot compare can
    # lane-broadcast without any in-kernel reshape.
    enc_ids = enc_X.T.reshape(T_enc * B, 1)
    dec_ids = dec_X.T.reshape(T_dec * B, 1)

    vmem = pl.BlockSpec(memory_space=pltpu.MemorySpace.VMEM)
    logits_p, h_final = pl.pallas_call(
        _seq2seq_kernel,
        out_shape=(jax.ShapeDtypeStruct((B, T_dec, Vp), jnp.float32),
                   jax.ShapeDtypeStruct((B, H), jnp.float32)),
        in_specs=[vmem] * 13,
        out_specs=(vmem, vmem),
        scratch_shapes=[pltpu.VMEM((T_dec * B, H), jnp.float32)],
    )(enc_ids, dec_ids,
      params["enc_emb"], params["enc_wxh"], params["enc_whh"], params["enc_bh"],
      params["dec_emb"], params["dec_wxe"], params["dec_wxc"], params["dec_whh"],
      params["dec_bh"],
      params["dec_who_p"], params["dec_bo_p"])

    # Only the lane-padding slice remains (negligible at Vp=128); the layout
    # transpose was eliminated by writing (B, T_dec, Vp) from the kernel.
    return logits_p[:, :, :V], h_final


# ----------------------------- pure-JAX reference --------------------------


def reference_forward(params, enc_X, dec_X):
    x_emb = jnp.take(params["enc_emb"], enc_X, axis=0)  # (B, T, E)
    B = x_emb.shape[0]
    H = params["enc_whh"].shape[0]

    def enc_step(h, x_t):
        h = jnp.tanh(x_t @ params["enc_wxh"] + h @ params["enc_whh"] + params["enc_bh"])
        return h, None

    h0 = jnp.zeros((B, H), jnp.float32)
    h_enc, _ = lax.scan(enc_step, h0, jnp.transpose(x_emb, (1, 0, 2)))

    d_emb = jnp.take(params["dec_emb"], dec_X, axis=0)  # (B, T, E)

    def dec_step(h, x_t):
        h = jnp.tanh(
            x_t @ params["dec_wxe"] + h_enc @ params["dec_wxc"]
            + h @ params["dec_whh"] + params["dec_bh"]
        )
        logit = h @ params["dec_who"] + params["dec_bo"]
        return h, logit

    h_fin, logits = lax.scan(dec_step, h_enc, jnp.transpose(d_emb, (1, 0, 2)))
    return jnp.transpose(logits, (1, 0, 2)), h_fin


# ----------------------------- main ----------------------------------------


def init_params(key, V, E, H):
    ks = jax.random.split(key, 9)
    s = 0.1
    return {
        "enc_emb": s * jax.random.normal(ks[0], (V, E), jnp.float32),
        "enc_wxh": s * jax.random.normal(ks[1], (E, H), jnp.float32),
        "enc_whh": s * jax.random.normal(ks[2], (H, H), jnp.float32),
        "enc_bh": jnp.zeros((1, H), jnp.float32),
        "dec_emb": s * jax.random.normal(ks[3], (V, E), jnp.float32),
        "dec_wxe": s * jax.random.normal(ks[4], (E, H), jnp.float32),
        "dec_wxc": s * jax.random.normal(ks[5], (H, H), jnp.float32),
        "dec_whh": s * jax.random.normal(ks[6], (H, H), jnp.float32),
        "dec_bh": jnp.zeros((1, H), jnp.float32),
        "dec_who": s * jax.random.normal(ks[7], (H, V), jnp.float32),
        "dec_bo": jnp.zeros((1, V), jnp.float32),
    }


if __name__ == "__main__":
    V, E, H = 32, 32, 32
    B, T_enc, T_dec = 8, 8, 8

    key = jax.random.PRNGKey(0)
    kp, ke, kd = jax.random.split(key, 3)
    params = prepare_params(init_params(kp, V, E, H))
    enc_X = jax.random.randint(ke, (B, T_enc), 0, V, dtype=jnp.int32)
    dec_X = jax.random.randint(kd, (B, T_dec), 0, V, dtype=jnp.int32)

    logits, state = encoder_decoder_forward(params, enc_X, dec_X)
    jax.block_until_ready((logits, state))

    ref_logits, ref_state = reference_forward(params, enc_X, dec_X)
    np.testing.assert_allclose(np.asarray(logits), np.asarray(ref_logits),
                               rtol=1e-3, atol=1e-3)
    np.testing.assert_allclose(np.asarray(state), np.asarray(ref_state),
                               rtol=1e-3, atol=1e-3)

    assert logits.shape == (B, T_dec, V) and state.shape == (B, H)
    print("KERNEL_OK")
</pallas_src>

<mosaic_0001>
module attributes {stable_mosaic.version = 11 : i64} {
  func.func @_seq2seq_kernel(%arg0: memref<64x1xi32, #tpu.memory_space<vmem>>, %arg1: memref<64x1xi32, #tpu.memory_space<vmem>>, %arg2: memref<32x32xf32, #tpu.memory_space<vmem>>, %arg3: memref<32x32xf32, #tpu.memory_space<vmem>>, %arg4: memref<32x32xf32, #tpu.memory_space<vmem>>, %arg5: memref<1x32xf32, #tpu.memory_space<vmem>>, %arg6: memref<32x32xf32, #tpu.memory_space<vmem>>, %arg7: memref<32x32xf32, #tpu.memory_space<vmem>>, %arg8: memref<32x32xf32, #tpu.memory_space<vmem>>, %arg9: memref<32x32xf32, #tpu.memory_space<vmem>>, %arg10: memref<1x32xf32, #tpu.memory_space<vmem>>, %arg11: memref<32x128xf32, #tpu.memory_space<vmem>>, %arg12: memref<1x128xf32, #tpu.memory_space<vmem>>, %arg13: memref<8x8x128xf32, #tpu.memory_space<vmem>>, %arg14: memref<8x32xf32, #tpu.memory_space<vmem>>, %arg15: memref<64x32xf32, #tpu.memory_space<vmem>>) attributes {dimension_semantics = [], scalar_prefetch = 0 : i64, scratch_operands = 1 : i64, tpu.core_type = #tpu.core_type<tc>} {
    %c0 = arith.constant 0 : index
    %c0_0 = arith.constant 0 : index
    %0 = vector.load %arg2[%c0, %c0_0] : memref<32x32xf32, #tpu.memory_space<vmem>>, vector<32x32xf32>
    %c0_1 = arith.constant 0 : index
    %c0_2 = arith.constant 0 : index
    %1 = vector.load %arg3[%c0_1, %c0_2] : memref<32x32xf32, #tpu.memory_space<vmem>>, vector<32x32xf32>
    %cst = arith.constant dense<0.000000e+00> : vector<32x32xf32>
    %2 = tpu.matmul %0, %1, %cst {dimension_numbers = #tpu.dot_dimension_numbers<[1], [0], [0], [1], [0, 0, 1, 1], [], []>} : vector<32x32xf32>, vector<32x32xf32>, vector<32x32xf32> -> vector<32x32xf32>
    %c0_3 = arith.constant 0 : index
    %c0_4 = arith.constant 0 : index
    %3 = vector.load %arg0[%c0_3, %c0_4] : memref<64x1xi32, #tpu.memory_space<vmem>>, vector<64x1xi32>
    %4 = tpu.iota {dimensions = array<i32: 1>} : vector<64x32xi32>
    %5 = vector.broadcast %3 : vector<64x1xi32> to vector<64x32xi32>
    %6 = arith.cmpi eq, %4, %5 : vector<64x32xi32>
    %7 = arith.extui %6 : vector<64x32xi1> to vector<64x32xi32>
    %8 = arith.sitofp %7 : vector<64x32xi32> to vector<64x32xf32>
    %cst_5 = arith.constant dense<0.000000e+00> : vector<64x32xf32>
    %9 = tpu.matmul %8, %2, %cst_5 {dimension_numbers = #tpu.dot_dimension_numbers<[1], [0], [0], [1], [0, 0, 1, 1], [], []>} : vector<64x32xf32>, vector<32x32xf32>, vector<64x32xf32> -> vector<64x32xf32>
    %c0_6 = arith.constant 0 : index
    %c0_7 = arith.constant 0 : index
    %10 = vector.load %arg5[%c0_6, %c0_7] : memref<1x32xf32, #tpu.memory_space<vmem>>, vector<1x32xf32>
    %11 = vector.broadcast %10 : vector<1x32xf32> to vector<64x32xf32>
    %12 = arith.addf %9, %11 : vector<64x32xf32>
    %c0_8 = arith.constant 0 : index
    %c0_9 = arith.constant 0 : index
    %13 = vector.load %arg6[%c0_8, %c0_9] : memref<32x32xf32, #tpu.memory_space<vmem>>, vector<32x32xf32>
    %c0_10 = arith.constant 0 : index
    %c0_11 = arith.constant 0 : index
    %14 = vector.load %arg7[%c0_10, %c0_11] : memref<32x32xf32, #tpu.memory_space<vmem>>, vector<32x32xf32>
    %cst_12 = arith.constant dense<0.000000e+00> : vector<32x32xf32>
    %15 = tpu.matmul %13, %14, %cst_12 {dimension_numbers = #tpu.dot_dimension_numbers<[1], [0], [0], [1], [0, 0, 1, 1], [], []>} : vector<32x32xf32>, vector<32x32xf32>, vector<32x32xf32> -> vector<32x32xf32>
    %c0_13 = arith.constant 0 : index
    %c0_14 = arith.constant 0 : index
    %16 = vector.load %arg1[%c0_13, %c0_14] : memref<64x1xi32, #tpu.memory_space<vmem>>, vector<64x1xi32>
    %17 = tpu.iota {dimensions = array<i32: 1>} : vector<64x32xi32>
    %18 = vector.broadcast %16 : vector<64x1xi32> to vector<64x32xi32>
    %19 = arith.cmpi eq, %17, %18 : vector<64x32xi32>
    %20 = arith.extui %19 : vector<64x32xi1> to vector<64x32xi32>
    %21 = arith.sitofp %20 : vector<64x32xi32> to vector<64x32xf32>
    %cst_15 = arith.constant dense<0.000000e+00> : vector<64x32xf32>
    %22 = tpu.matmul %21, %15, %cst_15 {dimension_numbers = #tpu.dot_dimension_numbers<[1], [0], [0], [1], [0, 0, 1, 1], [], []>} : vector<64x32xf32>, vector<32x32xf32>, vector<64x32xf32> -> vector<64x32xf32>
    %c0_16 = arith.constant 0 : index
    %c0_17 = arith.constant 0 : index
    %23 = vector.load %arg4[%c0_16, %c0_17] : memref<32x32xf32, #tpu.memory_space<vmem>>, vector<32x32xf32>
    %c0_18 = arith.constant 0 : index
    %c0_19 = arith.constant 0 : index
    %24 = vector.load %arg9[%c0_18, %c0_19] : memref<32x32xf32, #tpu.memory_space<vmem>>, vector<32x32xf32>
    %cst_20 = arith.constant 0.000000e+00 : f32
    %25 = vector.broadcast %cst_20 : f32 to vector<8x32xf32>
    %26 = vector.extract_strided_slice %12 {offsets = [0, 0], sizes = [8, 32], strides = [1, 1]} : vector<64x32xf32> to vector<8x32xf32>
    %cst_21 = arith.constant dense<0.000000e+00> : vector<8x32xf32>
    %27 = tpu.matmul %25, %23, %cst_21 {dimension_numbers = #tpu.dot_dimension_numbers<[1], [0], [0], [1], [0, 0, 1, 1], [], []>} : vector<8x32xf32>, vector<32x32xf32>, vector<8x32xf32> -> vector<8x32xf32>
    %28 = arith.addf %26, %27 : vector<8x32xf32>
    %29 = math.tanh %28 : vector<8x32xf32>
    %30 = vector.extract_strided_slice %12 {offsets = [8, 0], sizes = [8, 32], strides = [1, 1]} : vector<64x32xf32> to vector<8x32xf32>
    %cst_22 = arith.constant dense<0.000000e+00> : vector<8x32xf32>
    %31 = tpu.matmul %29, %23, %cst_22 {dimension_numbers = #tpu.dot_dimension_numbers<[1], [0], [0], [1], [0, 0, 1, 1], [], []>} : vector<8x32xf32>, vector<32x32xf32>, vector<8x32xf32> -> vector<8x32xf32>
    %32 = arith.addf %30, %31 : vector<8x32xf32>
    %33 = math.tanh %32 : vector<8x32xf32>
    %34 = vector.extract_strided_slice %12 {offsets = [16, 0], sizes = [8, 32], strides = [1, 1]} : vector<64x32xf32> to vector<8x32xf32>
    %cst_23 = arith.constant dense<0.000000e+00> : vector<8x32xf32>
    %35 = tpu.matmul %33, %23, %cst_23 {dimension_numbers = #tpu.dot_dimension_numbers<[1], [0], [0], [1], [0, 0, 1, 1], [], []>} : vector<8x32xf32>, vector<32x32xf32>, vector<8x32xf32> -> vector<8x32xf32>
    %36 = arith.addf %34, %35 : vector<8x32xf32>
    %37 = math.tanh %36 : vector<8x32xf32>
    %38 = vector.extract_strided_slice %12 {offsets = [24, 0], sizes = [8, 32], strides = [1, 1]} : vector<64x32xf32> to vector<8x32xf32>
    %cst_24 = arith.constant dense<0.000000e+00> : vector<8x32xf32>
    %39 = tpu.matmul %37, %23, %cst_24 {dimension_numbers = #tpu.dot_dimension_numbers<[1], [0], [0], [1], [0, 0, 1, 1], [], []>} : vector<8x32xf32>, vector<32x32xf32>, vector<8x32xf32> -> vector<8x32xf32>
    %40 = arith.addf %38, %39 : vector<8x32xf32>
    %41 = math.tanh %40 : vector<8x32xf32>
    %42 = vector.extract_strided_slice %12 {offsets = [32, 0], sizes = [8, 32], strides = [1, 1]} : vector<64x32xf32> to vector<8x32xf32>
    %cst_25 = arith.constant dense<0.000000e+00> : vector<8x32xf32>
    %43 = tpu.matmul %41, %23, %cst_25 {dimension_numbers = #tpu.dot_dimension_numbers<[1], [0], [0], [1], [0, 0, 1, 1], [], []>} : vector<8x32xf32>, vector<32x32xf32>, vector<8x32xf32> -> vector<8x32xf32>
    %44 = arith.addf %42, %43 : vector<8x32xf32>
    %45 = math.tanh %44 : vector<8x32xf32>
    %46 = vector.extract_strided_slice %12 {offsets = [40, 0], sizes = [8, 32], strides = [1, 1]} : vector<64x32xf32> to vector<8x32xf32>
    %cst_26 = arith.constant dense<0.000000e+00> : vector<8x32xf32>
    %47 = tpu.matmul %45, %23, %cst_26 {dimension_numbers = #tpu.dot_dimension_numbers<[1], [0], [0], [1], [0, 0, 1, 1], [], []>} : vector<8x32xf32>, vector<32x32xf32>, vector<8x32xf32> -> vector<8x32xf32>
    %48 = arith.addf %46, %47 : vector<8x32xf32>
    %49 = math.tanh %48 : vector<8x32xf32>
    %50 = vector.extract_strided_slice %12 {offsets = [48, 0], sizes = [8, 32], strides = [1, 1]} : vector<64x32xf32> to vector<8x32xf32>
    %cst_27 = arith.constant dense<0.000000e+00> : vector<8x32xf32>
    %51 = tpu.matmul %49, %23, %cst_27 {dimension_numbers = #tpu.dot_dimension_numbers<[1], [0], [0], [1], [0, 0, 1, 1], [], []>} : vector<8x32xf32>, vector<32x32xf32>, vector<8x32xf32> -> vector<8x32xf32>
    %52 = arith.addf %50, %51 : vector<8x32xf32>
    %53 = math.tanh %52 : vector<8x32xf32>
    %54 = vector.extract_strided_slice %12 {offsets = [56, 0], sizes = [8, 32], strides = [1, 1]} : vector<64x32xf32> to vector<8x32xf32>
    %cst_28 = arith.constant dense<0.000000e+00> : vector<8x32xf32>
    %55 = tpu.matmul %53, %23, %cst_28 {dimension_numbers = #tpu.dot_dimension_numbers<[1], [0], [0], [1], [0, 0, 1, 1], [], []>} : vector<8x32xf32>, vector<32x32xf32>, vector<8x32xf32> -> vector<8x32xf32>
    %56 = arith.addf %54, %55 : vector<8x32xf32>
    %57 = math.tanh %56 : vector<8x32xf32>
    %c0_29 = arith.constant 0 : index
    %c0_30 = arith.constant 0 : index
    %58 = vector.load %arg8[%c0_29, %c0_30] : memref<32x32xf32, #tpu.memory_space<vmem>>, vector<32x32xf32>
    %cst_31 = arith.constant dense<0.000000e+00> : vector<8x32xf32>
    %59 = tpu.matmul %57, %58, %cst_31 {dimension_numbers = #tpu.dot_dimension_numbers<[1], [0], [0], [1], [0, 0, 1, 1], [], []>} : vector<8x32xf32>, vector<32x32xf32>, vector<8x32xf32> -> vector<8x32xf32>
    %c0_32 = arith.constant 0 : index
    %c0_33 = arith.constant 0 : index
    %60 = vector.load %arg10[%c0_32, %c0_33] : memref<1x32xf32, #tpu.memory_space<vmem>>, vector<1x32xf32>
    %61 = vector.broadcast %60 : vector<1x32xf32> to vector<8x32xf32>
    %62 = arith.addf %59, %61 : vector<8x32xf32>
    %63 = vector.extract_strided_slice %22 {offsets = [0, 0], sizes = [8, 32], strides = [1, 1]} : vector<64x32xf32> to vector<8x32xf32>
    %64 = arith.addf %63, %62 : vector<8x32xf32>
    %cst_34 = arith.constant dense<0.000000e+00> : vector<8x32xf32>
    %65 = tpu.matmul %57, %24, %cst_34 {dimension_numbers = #tpu.dot_dimension_numbers<[1], [0], [0], [1], [0, 0, 1, 1], [], []>} : vector<8x32xf32>, vector<32x32xf32>, vector<8x32xf32> -> vector<8x32xf32>
    %66 = arith.addf %64, %65 : vector<8x32xf32>
    %67 = math.tanh %66 : vector<8x32xf32>
    %c0_35 = arith.constant 0 : index
    %c0_36 = arith.constant 0 : index
    %68 = vector.load %arg15[%c0_35, %c0_36] : memref<64x32xf32, #tpu.memory_space<vmem>>, vector<8x32xf32>
    tpu.vector_store %arg15[%c0_35, %c0_36], %67 {strides = array<i32>} : memref<64x32xf32, #tpu.memory_space<vmem>>, vector<8x32xf32>,
    %69 = vector.extract_strided_slice %22 {offsets = [8, 0], sizes = [8, 32], strides = [1, 1]} : vector<64x32xf32> to vector<8x32xf32>
    %70 = arith.addf %69, %62 : vector<8x32xf32>
    %cst_37 = arith.constant dense<0.000000e+00> : vector<8x32xf32>
    %71 = tpu.matmul %67, %24, %cst_37 {dimension_numbers = #tpu.dot_dimension_numbers<[1], [0], [0], [1], [0, 0, 1, 1], [], []>} : vector<8x32xf32>, vector<32x32xf32>, vector<8x32xf32> -> vector<8x32xf32>
    %72 = arith.addf %70, %71 : vector<8x32xf32>
    %73 = math.tanh %72 : vector<8x32xf32>
    %c8 = arith.constant 8 : index
    %c0_38 = arith.constant 0 : index
    %74 = vector.load %arg15[%c8, %c0_38] : memref<64x32xf32, #tpu.memory_space<vmem>>, vector<8x32xf32>
    tpu.vector_store %arg15[%c8, %c0_38], %73 {strides = array<i32>} : memref<64x32xf32, #tpu.memory_space<vmem>>, vector<8x32xf32>,
    %75 = vector.extract_strided_slice %22 {offsets = [16, 0], sizes = [8, 32], strides = [1, 1]} : vector<64x32xf32> to vector<8x32xf32>
    %76 = arith.addf %75, %62 : vector<8x32xf32>
    %cst_39 = arith.constant dense<0.000000e+00> : vector<8x32xf32>
    %77 = tpu.matmul %73, %24, %cst_39 {dimension_numbers = #tpu.dot_dimension_numbers<[1], [0], [0], [1], [0, 0, 1, 1], [], []>} : vector<8x32xf32>, vector<32x32xf32>, vector<8x32xf32> -> vector<8x32xf32>
    %78 = arith.addf %76, %77 : vector<8x32xf32>
    %79 = math.tanh %78 : vector<8x32xf32>
    %c16 = arith.constant 16 : index
    %c0_40 = arith.constant 0 : index
    %80 = vector.load %arg15[%c16, %c0_40] : memref<64x32xf32, #tpu.memory_space<vmem>>, vector<8x32xf32>
    tpu.vector_store %arg15[%c16, %c0_40], %79 {strides = array<i32>} : memref<64x32xf32, #tpu.memory_space<vmem>>, vector<8x32xf32>,
    %81 = vector.extract_strided_slice %22 {offsets = [24, 0], sizes = [8, 32], strides = [1, 1]} : vector<64x32xf32> to vector<8x32xf32>
    %82 = arith.addf %81, %62 : vector<8x32xf32>
    %cst_41 = arith.constant dense<0.000000e+00> : vector<8x32xf32>
    %83 = tpu.matmul %79, %24, %cst_41 {dimension_numbers = #tpu.dot_dimension_numbers<[1], [0], [0], [1], [0, 0, 1, 1], [], []>} : vector<8x32xf32>, vector<32x32xf32>, vector<8x32xf32> -> vector<8x32xf32>
    %84 = arith.addf %82, %83 : vector<8x32xf32>
    %85 = math.tanh %84 : vector<8x32xf32>
    %c24 = arith.constant 24 : index
    %c0_42 = arith.constant 0 : index
    %86 = vector.load %arg15[%c24, %c0_42] : memref<64x32xf32, #tpu.memory_space<vmem>>, vector<8x32xf32>
    tpu.vector_store %arg15[%c24, %c0_42], %85 {strides = array<i32>} : memref<64x32xf32, #tpu.memory_space<vmem>>, vector<8x32xf32>,
    %87 = vector.extract_strided_slice %22 {offsets = [32, 0], sizes = [8, 32], strides = [1, 1]} : vector<64x32xf32> to vector<8x32xf32>
    %88 = arith.addf %87, %62 : vector<8x32xf32>
    %cst_43 = arith.constant dense<0.000000e+00> : vector<8x32xf32>
    %89 = tpu.matmul %85, %24, %cst_43 {dimension_numbers = #tpu.dot_dimension_numbers<[1], [0], [0], [1], [0, 0, 1, 1], [], []>} : vector<8x32xf32>, vector<32x32xf32>, vector<8x32xf32> -> vector<8x32xf32>
    %90 = arith.addf %88, %89 : vector<8x32xf32>
    %91 = math.tanh %90 : vector<8x32xf32>
    %c32 = arith.constant 32 : index
    %c0_44 = arith.constant 0 : index
    %92 = vector.load %arg15[%c32, %c0_44] : memref<64x32xf32, #tpu.memory_space<vmem>>, vector<8x32xf32>
    tpu.vector_store %arg15[%c32, %c0_44], %91 {strides = array<i32>} : memref<64x32xf32, #tpu.memory_space<vmem>>, vector<8x32xf32>,
    %93 = vector.extract_strided_slice %22 {offsets = [40, 0], sizes = [8, 32], strides = [1, 1]} : vector<64x32xf32> to vector<8x32xf32>
    %94 = arith.addf %93, %62 : vector<8x32xf32>
    %cst_45 = arith.constant dense<0.000000e+00> : vector<8x32xf32>
    %95 = tpu.matmul %91, %24, %cst_45 {dimension_numbers = #tpu.dot_dimension_numbers<[1], [0], [0], [1], [0, 0, 1, 1], [], []>} : vector<8x32xf32>, vector<32x32xf32>, vector<8x32xf32> -> vector<8x32xf32>
    %96 = arith.addf %94, %95 : vector<8x32xf32>
    %97 = math.tanh %96 : vector<8x32xf32>
    %c40 = arith.constant 40 : index
    %c0_46 = arith.constant 0 : index
    %98 = vector.load %arg15[%c40, %c0_46] : memref<64x32xf32, #tpu.memory_space<vmem>>, vector<8x32xf32>
    tpu.vector_store %arg15[%c40, %c0_46], %97 {strides = array<i32>} : memref<64x32xf32, #tpu.memory_space<vmem>>, vector<8x32xf32>,
    %99 = vector.extract_strided_slice %22 {offsets = [48, 0], sizes = [8, 32], strides = [1, 1]} : vector<64x32xf32> to vector<8x32xf32>
    %100 = arith.addf %99, %62 : vector<8x32xf32>
    %cst_47 = arith.constant dense<0.000000e+00> : vector<8x32xf32>
    %101 = tpu.matmul %97, %24, %cst_47 {dimension_numbers = #tpu.dot_dimension_numbers<[1], [0], [0], [1], [0, 0, 1, 1], [], []>} : vector<8x32xf32>, vector<32x32xf32>, vector<8x32xf32> -> vector<8x32xf32>
    %102 = arith.addf %100, %101 : vector<8x32xf32>
    %103 = math.tanh %102 : vector<8x32xf32>
    %c48 = arith.constant 48 : index
    %c0_48 = arith.constant 0 : index
    %104 = vector.load %arg15[%c48, %c0_48] : memref<64x32xf32, #tpu.memory_space<vmem>>, vector<8x32xf32>
    tpu.vector_store %arg15[%c48, %c0_48], %103 {strides = array<i32>} : memref<64x32xf32, #tpu.memory_space<vmem>>, vector<8x32xf32>,
    %105 = vector.extract_strided_slice %22 {offsets = [56, 0], sizes = [8, 32], strides = [1, 1]} : vector<64x32xf32> to vector<8x32xf32>
    %106 = arith.addf %105, %62 : vector<8x32xf32>
    %cst_49 = arith.constant dense<0.000000e+00> : vector<8x32xf32>
    %107 = tpu.matmul %103, %24, %cst_49 {dimension_numbers = #tpu.dot_dimension_numbers<[1], [0], [0], [1], [0, 0, 1, 1], [], []>} : vector<8x32xf32>, vector<32x32xf32>, vector<8x32xf32> -> vector<8x32xf32>
    %108 = arith.addf %106, %107 : vector<8x32xf32>
    %109 = math.tanh %108 : vector<8x32xf32>
    %c56 = arith.constant 56 : index
    %c0_50 = arith.constant 0 : index
    %110 = vector.load %arg15[%c56, %c0_50] : memref<64x32xf32, #tpu.memory_space<vmem>>, vector<8x32xf32>
    tpu.vector_store %arg15[%c56, %c0_50], %109 {strides = array<i32>} : memref<64x32xf32, #tpu.memory_space<vmem>>, vector<8x32xf32>,
    %c0_51 = arith.constant 0 : index
    %c0_52 = arith.constant 0 : index
    %111 = vector.load %arg15[%c0_51, %c0_52] : memref<64x32xf32, #tpu.memory_space<vmem>>, vector<64x32xf32>
    %c0_53 = arith.constant 0 : index
    %c0_54 = arith.constant 0 : index
    %112 = vector.load %arg11[%c0_53, %c0_54] : memref<32x128xf32, #tpu.memory_space<vmem>>, vector<32x128xf32>
    %cst_55 = arith.constant dense<0.000000e+00> : vector<64x128xf32>
    %113 = tpu.matmul %111, %112, %cst_55 {dimension_numbers = #tpu.dot_dimension_numbers<[1], [0], [0], [1], [0, 0, 1, 1], [], []>} : vector<64x32xf32>, vector<32x128xf32>, vector<64x128xf32> -> vector<64x128xf32>
    %c0_56 = arith.constant 0 : index
    %c0_57 = arith.constant 0 : index
    %114 = vector.load %arg12[%c0_56, %c0_57] : memref<1x128xf32, #tpu.memory_space<vmem>>, vector<1x128xf32>
    %115 = vector.broadcast %114 : vector<1x128xf32> to vector<64x128xf32>
    %116 = arith.addf %113, %115 : vector<64x128xf32>
    %117 = vector.extract_strided_slice %116 {offsets = [0, 0], sizes = [8, 128], strides = [1, 1]} : vector<64x128xf32> to vector<8x128xf32>
    %c0_58 = arith.constant 0 : index
    %c0_59 = arith.constant 0 : index
    %c0_60 = arith.constant 0 : index
    %118 = vector.load %arg13[%c0_58, %c0_59, %c0_60] : memref<8x8x128xf32, #tpu.memory_space<vmem>>, vector<8x1x128xf32>
    %119 = vector.shape_cast %118 : vector<8x1x128xf32> to vector<8x128xf32>
    %120 = vector.shape_cast %117 : vector<8x128xf32> to vector<8x1x128xf32>
    tpu.vector_store %arg13[%c0_58, %c0_59, %c0_60], %120 {strides = array<i32>} : memref<8x8x128xf32, #tpu.memory_space<vmem>>, vector<8x1x128xf32>,
    %121 = vector.extract_strided_slice %116 {offsets = [8, 0], sizes = [8, 128], strides = [1, 1]} : vector<64x128xf32> to vector<8x128xf32>
    %c0_61 = arith.constant 0 : index
    %c1 = arith.constant 1 : index
    %c0_62 = arith.constant 0 : index
    %122 = vector.load %arg13[%c0_61, %c1, %c0_62] : memref<8x8x128xf32, #tpu.memory_space<vmem>>, vector<8x1x128xf32>
    %123 = vector.shape_cast %122 : vector<8x1x128xf32> to vector<8x128xf32>
    %124 = vector.shape_cast %121 : vector<8x128xf32> to vector<8x1x128xf32>
    tpu.vector_store %arg13[%c0_61, %c1, %c0_62], %124 {strides = array<i32>} : memref<8x8x128xf32, #tpu.memory_space<vmem>>, vector<8x1x128xf32>,
    %125 = vector.extract_strided_slice %116 {offsets = [16, 0], sizes = [8, 128], strides = [1, 1]} : vector<64x128xf32> to vector<8x128xf32>
    %c0_63 = arith.constant 0 : index
    %c2 = arith.constant 2 : index
    %c0_64 = arith.constant 0 : index
    %126 = vector.load %arg13[%c0_63, %c2, %c0_64] : memref<8x8x128xf32, #tpu.memory_space<vmem>>, vector<8x1x128xf32>
    %127 = vector.shape_cast %126 : vector<8x1x128xf32> to vector<8x128xf32>
    %128 = vector.shape_cast %125 : vector<8x128xf32> to vector<8x1x128xf32>
    tpu.vector_store %arg13[%c0_63, %c2, %c0_64], %128 {strides = array<i32>} : memref<8x8x128xf32, #tpu.memory_space<vmem>>, vector<8x1x128xf32>,
    %129 = vector.extract_strided_slice %116 {offsets = [24, 0], sizes = [8, 128], strides = [1, 1]} : vector<64x128xf32> to vector<8x128xf32>
    %c0_65 = arith.constant 0 : index
    %c3 = arith.constant 3 : index
    %c0_66 = arith.constant 0 : index
    %130 = vector.load %arg13[%c0_65, %c3, %c0_66] : memref<8x8x128xf32, #tpu.memory_space<vmem>>, vector<8x1x128xf32>
    %131 = vector.shape_cast %130 : vector<8x1x128xf32> to vector<8x128xf32>
    %132 = vector.shape_cast %129 : vector<8x128xf32> to vector<8x1x128xf32>
    tpu.vector_store %arg13[%c0_65, %c3, %c0_66], %132 {strides = array<i32>} : memref<8x8x128xf32, #tpu.memory_space<vmem>>, vector<8x1x128xf32>,
    %133 = vector.extract_strided_slice %116 {offsets = [32, 0], sizes = [8, 128], strides = [1, 1]} : vector<64x128xf32> to vector<8x128xf32>
    %c0_67 = arith.constant 0 : index
    %c4 = arith.constant 4 : index
    %c0_68 = arith.constant 0 : index
    %134 = vector.load %arg13[%c0_67, %c4, %c0_68] : memref<8x8x128xf32, #tpu.memory_space<vmem>>, vector<8x1x128xf32>
    %135 = vector.shape_cast %134 : vector<8x1x128xf32> to vector<8x128xf32>
    %136 = vector.shape_cast %133 : vector<8x128xf32> to vector<8x1x128xf32>
    tpu.vector_store %arg13[%c0_67, %c4, %c0_68], %136 {strides = array<i32>} : memref<8x8x128xf32, #tpu.memory_space<vmem>>, vector<8x1x128xf32>,
    %137 = vector.extract_strided_slice %116 {offsets = [40, 0], sizes = [8, 128], strides = [1, 1]} : vector<64x128xf32> to vector<8x128xf32>
    %c0_69 = arith.constant 0 : index
    %c5 = arith.constant 5 : index
    %c0_70 = arith.constant 0 : index
    %138 = vector.load %arg13[%c0_69, %c5, %c0_70] : memref<8x8x128xf32, #tpu.memory_space<vmem>>, vector<8x1x128xf32>
    %139 = vector.shape_cast %138 : vector<8x1x128xf32> to vector<8x128xf32>
    %140 = vector.shape_cast %137 : vector<8x128xf32> to vector<8x1x128xf32>
    tpu.vector_store %arg13[%c0_69, %c5, %c0_70], %140 {strides = array<i32>} : memref<8x8x128xf32, #tpu.memory_space<vmem>>, vector<8x1x128xf32>,
    %141 = vector.extract_strided_slice %116 {offsets = [48, 0], sizes = [8, 128], strides = [1, 1]} : vector<64x128xf32> to vector<8x128xf32>
    %c0_71 = arith.constant 0 : index
    %c6 = arith.constant 6 : index
    %c0_72 = arith.constant 0 : index
    %142 = vector.load %arg13[%c0_71, %c6, %c0_72] : memref<8x8x128xf32, #tpu.memory_space<vmem>>, vector<8x1x128xf32>
    %143 = vector.shape_cast %142 : vector<8x1x128xf32> to vector<8x128xf32>
    %144 = vector.shape_cast %141 : vector<8x128xf32> to vector<8x1x128xf32>
    tpu.vector_store %arg13[%c0_71, %c6, %c0_72], %144 {strides = array<i32>} : memref<8x8x128xf32, #tpu.memory_space<vmem>>, vector<8x1x128xf32>,
    %145 = vector.extract_strided_slice %116 {offsets = [56, 0], sizes = [8, 128], strides = [1, 1]} : vector<64x128xf32> to vector<8x128xf32>
    %c0_73 = arith.constant 0 : index
    %c7 = arith.constant 7 : index
    %c0_74 = arith.constant 0 : index
    %146 = vector.load %arg13[%c0_73, %c7, %c0_74] : memref<8x8x128xf32, #tpu.memory_space<vmem>>, vector<8x1x128xf32>
    %147 = vector.shape_cast %146 : vector<8x1x128xf32> to vector<8x128xf32>
    %148 = vector.shape_cast %145 : vector<8x128xf32> to vector<8x1x128xf32>
    tpu.vector_store %arg13[%c0_73, %c7, %c0_74], %148 {strides = array<i32>} : memref<8x8x128xf32, #tpu.memory_space<vmem>>, vector<8x1x128xf32>,
    %c0_75 = arith.constant 0 : index
    %c0_76 = arith.constant 0 : index
    %149 = vector.load %arg14[%c0_75, %c0_76] : memref<8x32xf32, #tpu.memory_space<vmem>>, vector<8x32xf32>
    tpu.vector_store %arg14[%c0_75, %c0_76], %109 {strides = array<i32>} : memref<8x32xf32, #tpu.memory_space<vmem>>, vector<8x32xf32>,
    return
  }
}

</mosaic_0001>

<llo_original>
// kernel: encoder_decoder_forward.1
$region0: #{encoder_decoder_forward.1}
  #allocation0 [shape = 'u32[]', space=smem, size = 0x4, offset = 0x4, fixed_abs, tag = 'smem constant byte address 0x4 - core index']
  #allocation1 [shape = 'u32[72,128]{1,0:T(1,128)}', space=vmem, size = 0x9000, scoped, tag = 'internal scratch']
  #allocation2 [shape = 'f32[64,32]{1,0:T(8,128)}', space=vmem, size = 0x8000, scoped, tag = 'scratch operand']
  %s0 = inlined_call_operand.vmem [shape: s32[64,1], index: 0, kind: input, shape index: {}]
  %s1 = inlined_call_operand.vmem [shape: s32[64,1], index: 1, kind: input, shape index: {}]
  %s2 = inlined_call_operand.vmem [shape: f32[32,32], index: 2, kind: input, shape index: {}]
  %s3 = inlined_call_operand.vmem [shape: f32[32,32], index: 3, kind: input, shape index: {}]
  %s4 = inlined_call_operand.vmem [shape: f32[32,32], index: 4, kind: input, shape index: {}]
  %s5 = inlined_call_operand.vmem [shape: f32[1,32], index: 5, kind: input, shape index: {}]
  %s6 = inlined_call_operand.vmem [shape: f32[32,32], index: 6, kind: input, shape index: {}]
  %s7 = inlined_call_operand.vmem [shape: f32[32,32], index: 7, kind: input, shape index: {}]
  %s8 = inlined_call_operand.hbm [shape: f32[32,32], index: 8, kind: input, shape index: {}]
  %s9 = inlined_call_operand.hbm [shape: f32[32,32], index: 9, kind: input, shape index: {}]
  %s10 = inlined_call_operand.vmem [shape: f32[1,32], index: 10, kind: input, shape index: {}]
  %s11 = inlined_call_operand.hbm [shape: f32[32,128], index: 11, kind: input, shape index: {}]
  %s12 = inlined_call_operand.vmem [shape: f32[1,128], index: 12, kind: input, shape index: {}]
  %s13 = inlined_call_operand.hbm [shape: f32[8,8,128], index: 13, kind: output, shape index: {0}]
  %s14 = inlined_call_operand.hbm [shape: f32[8,32], index: 14, kind: output, shape index: {1}]
  %15 = xla_tuple %s13, %s14
  %s16 = sld [smem:[#allocation0]]
  $region82: #{encoder_decoder_forward.1} parent=0
    _
  %s18 = ssub.s32 1, %s16
  %s19 = scalar_select 0, %s18, %s16
  $region1: #{encoder_decoder_forward.1} parent=0
    #allocation3 [shape = 'u8[16384]{0}', space=vmem, size = 0x4000, scoped, tag = 'input window, operand 8, single buffered']
    #allocation4 [shape = 's32[1]{0}', space=sflag, size = 0x4, scoped, tag = 'scoped memory for encoder_decoder_forward.1']
    #allocation5 [shape = 's32[1]{0}', space=sflag, size = 0x4, scoped, tag = 'scoped memory for encoder_decoder_forward.1']
    #allocation6 [shape = 'u8[16384]{0}', space=vmem, size = 0x4000, scoped, tag = 'input window, operand 9, single buffered']
    #allocation7 [shape = 's32[1]{0}', space=sflag, size = 0x4, scoped, tag = 'scoped memory for encoder_decoder_forward.1']
    #allocation8 [shape = 'u8[16384]{0}', space=vmem, size = 0x4000, scoped, tag = 'input window, operand 11, single buffered']
    #allocation9 [shape = 'u8[32768]{0}', space=vmem, size = 0x8000, scoped, tag = 'output window, operand 0, single buffered']
    #allocation10 [shape = 'u8[4096]{0}', space=vmem, size = 0x1000, scoped, tag = 'output window, operand 1, single buffered']
    #allocation11 [shape = 's32[1]{0}', space=sflag, size = 0x4, scoped, tag = 'scoped memory for encoder_decoder_forward.1']
    %20 = vsyncpa [#allocation4], 0
    %21 = vsyncpa [#allocation7], 0
    %22 = vsyncpa [#allocation5], 0
    %23 = vsyncpa [#allocation11], 0
    // Predicated region
    $region2: #{encoder_decoder_forward.1} parent=1 // pred_check
      _
    $region3: #{encoder_decoder_forward.1} parent=1 // pred_check_branch
      %25 = sbr.rel (0) target = $region5
    $region4: #{encoder_decoder_forward.1} parent=1 // pred_region
      _
    $region5: #{encoder_decoder_forward.1} parent=1 // pred_fallthru
      _
    // Predicated region
    $region6: #{encoder_decoder_forward.1} parent=1 // pred_check
      _
    $region7: #{encoder_decoder_forward.1} parent=1 // pred_check_branch
      %27 = sbr.rel (0) target = $region9
    $region8: #{encoder_decoder_forward.1} parent=1 // pred_region
      _
    $region9: #{encoder_decoder_forward.1} parent=1 // pred_fallthru
      _
    // Predicated region
    $region10: #{encoder_decoder_forward.1} parent=1 // pred_check
      _
    $region11: #{encoder_decoder_forward.1} parent=1 // pred_check_branch
      %29 = sbr.rel (0) target = $region13
    $region12: #{encoder_decoder_forward.1} parent=1 // pred_region
      _
    $region13: #{encoder_decoder_forward.1} parent=1 // pred_fallthru
      _
    // Predicated region
    $region14: #{encoder_decoder_forward.1} parent=1 // pred_check
      _
    $region15: #{encoder_decoder_forward.1} parent=1 // pred_check_branch
      %31 = sbr.rel (0) target = $region17
    $region16: #{encoder_decoder_forward.1} parent=1 // pred_region
      _
    $region17: #{encoder_decoder_forward.1} parent=1 // pred_fallthru
      _
    // Predicated region
    $region18: #{encoder_decoder_forward.1} parent=1 // pred_check
      _
    $region19: #{encoder_decoder_forward.1} parent=1 // pred_check_branch
      %33 = sbr.rel (0) target = $region21
    $region20: #{encoder_decoder_forward.1} parent=1 // pred_region
      _
    $region21: #{encoder_decoder_forward.1} parent=1 // pred_fallthru
      _
    // Predicated region
    $region22: #{encoder_decoder_forward.1} parent=1 // pred_check
      _
    $region23: #{encoder_decoder_forward.1} parent=1 // pred_check_branch
      %35 = sbr.rel (0) target = $region25
    $region24: #{encoder_decoder_forward.1} parent=1 // pred_region
      _
    $region25: #{encoder_decoder_forward.1} parent=1 // pred_fallthru
      _
    // Predicated region
    $region26: #{encoder_decoder_forward.1} parent=1 // pred_check
      _
    $region27: #{encoder_decoder_forward.1} parent=1 // pred_check_branch
      %37 = sbr.rel (0) target = $region29
    $region28: #{encoder_decoder_forward.1} parent=1 // pred_region
      _
    $region29: #{encoder_decoder_forward.1} parent=1 // pred_fallthru
      _
    // Predicated region
    $region30: #{encoder_decoder_forward.1} parent=1 // pred_check
      _
    $region31: #{encoder_decoder_forward.1} parent=1 // pred_check_branch
      %39 = sbr.rel (0) target = $region33
    $region32: #{encoder_decoder_forward.1} parent=1 // pred_region
      _
    $region33: #{encoder_decoder_forward.1} parent=1 // pred_fallthru
      _
    // Predicated region
    $region34: #{encoder_decoder_forward.1} parent=1 // pred_check
      _
    $region35: #{encoder_decoder_forward.1} parent=1 // pred_check_branch
      %41 = sbr.rel (0) target = $region37
    $region36: #{encoder_decoder_forward.1} parent=1 // pred_region
      %43 = vsyncadd [#allocation4], 0
      %s44 = sshll.u32 %s8, 4
      %s45 = int_to_ptr.hbm [resolvable:$true] %s44
      %s46 = sshll.u32 [#allocation3], 4
      %s47 = int_to_ptr.vmem [resolvable:$true] %s46
      %52 = dma.hbm_to_vmem [thread:$0]  %s45, 512, %s47, [#allocation4], 128, 128, 8
    $region37: #{encoder_decoder_forward.1} parent=1 // pred_fallthru
      _
    // Predicated region
    $region38: #{encoder_decoder_forward.1} parent=1 // pred_check
      _
    $region39: #{encoder_decoder_forward.1} parent=1 // pred_check_branch
      %54 = sbr.rel (0) target = $region41
    $region40: #{encoder_decoder_forward.1} parent=1 // pred_region
      %56 = vsyncadd [#allocation7], 0
      %s57 = sshll.u32 %s9, 4
      %s58 = int_to_ptr.hbm [resolvable:$true] %s57
      %s59 = sshll.u32 [#allocation6], 4
      %s60 = int_to_ptr.vmem [resolvable:$true] %s59
      %65 = dma.hbm_to_vmem [thread:$0]  %s58, 512, %s60, [#allocation7], 128, 128, 8
    $region41: #{encoder_decoder_forward.1} parent=1 // pred_fallthru
      _
    // Predicated region
    $region42: #{encoder_decoder_forward.1} parent=1 // pred_check
      _
    $region43: #{encoder_decoder_forward.1} parent=1 // pred_check_branch
      %67 = sbr.rel (0) target = $region45
    $region44: #{encoder_decoder_forward.1} parent=1 // pred_region
      _
    $region45: #{encoder_decoder_forward.1} parent=1 // pred_fallthru
      _
    // Predicated region
    $region46: #{encoder_decoder_forward.1} parent=1 // pred_check
      _
    $region47: #{encoder_decoder_forward.1} parent=1 // pred_check_branch
      %69 = sbr.rel (0) target = $region49
    $region48: #{encoder_decoder_forward.1} parent=1 // pred_region
      %71 = vsyncadd [#allocation7], 0
      %s72 = sshll.u32 %s11, 4
      %s73 = int_to_ptr.hbm [resolvable:$true] %s72
      %s74 = sshll.u32 [#allocation8], 4
      %s75 = int_to_ptr.vmem [resolvable:$true] %s74
      %80 = dma.hbm_to_vmem [thread:$0]  %s73, 512, %s75, [#allocation7], 128, 128, 8
    $region49: #{encoder_decoder_forward.1} parent=1 // pred_fallthru
      _
    // Predicated region
    $region50: #{encoder_decoder_forward.1} parent=1 // pred_check
      _
    $region51: #{encoder_decoder_forward.1} parent=1 // pred_check_branch
      %82 = sbr.rel (0) target = $region53
    $region52: #{encoder_decoder_forward.1} parent=1 // pred_region
      _
    $region53: #{encoder_decoder_forward.1} parent=1 // pred_fallthru
      _
    // Predicated region
    $region54: #{encoder_decoder_forward.1} parent=1 // pred_check
      _
    $region55: #{encoder_decoder_forward.1} parent=1 // pred_check_branch
      %84 = sbr.rel (0) target = $region57
    $region56: #{encoder_decoder_forward.1} parent=1 // pred_region
      %86 = dma.done [#allocation4], 512
    $region57: #{encoder_decoder_forward.1} parent=1 // pred_fallthru
      _
    // Predicated region
    $region58: #{encoder_decoder_forward.1} parent=1 // pred_check
      _
    $region59: #{encoder_decoder_forward.1} parent=1 // pred_check_branch
      %88 = sbr.rel (0) target = $region61
    $region60: #{encoder_decoder_forward.1} parent=1 // pred_region
      %90 = dma.done [#allocation7], 512
    $region61: #{encoder_decoder_forward.1} parent=1 // pred_fallthru
      _
    // Predicated region
    $region62: #{encoder_decoder_forward.1} parent=1 // pred_check
      _
    $region63: #{encoder_decoder_forward.1} parent=1 // pred_check_branch
      %92 = sbr.rel (0) target = $region65
    $region64: #{encoder_decoder_forward.1} parent=1 // pred_region
      %94 = dma.done [#allocation7], 512
    $region65: #{encoder_decoder_forward.1} parent=1 // pred_fallthru
      _
    %v95 = vld [vmem:[%s2] sm:$0xff]
    %v96 = vld [vmem:[%s2 + $0x8] sm:$0xff]
    %v97 = vld [vmem:[%s2 + $0x10] sm:$0xff]
    %v98 = vld [vmem:[%s2 + $0x18] sm:$0xff]
    %v99 = vld [vmem:[%s3] sm:$0xff]
    %v100 = vld [vmem:[%s3 + $0x8] sm:$0xff]
    %v101 = vld [vmem:[%s3 + $0x10] sm:$0xff]
    %v102 = vld [vmem:[%s3 + $0x18] sm:$0xff]
    %vm103 = vcmask 261120
    %v105 = vsel %vm103, %v95, 0
    %v108 = vsel %vm103, %v96, 0
    %v111 = vsel %vm103, %v97, 0
    %v114 = vsel %vm103, %v98, 0
    %116 = vmatpush.msra.mxu0 0.0
    %117 = vmatpush.msra.mxu0 0.0
    %118 = vmatpush.msra.mxu0 0.0
    %119 = vmatpush.msra.mxu0 0.0
    %120 = vmatpush.msra.mxu0 0.0
    %121 = vmatpush.msra.mxu0 0.0
    %122 = vmatpush.msra.mxu0 0.0
    %123 = vmatpush.msra.mxu0 0.0
    %124 = vmatpush.msra.mxu0 0.0
    %125 = vmatpush.msra.mxu0 0.0
    %126 = vmatpush.msra.mxu0 0.0
    %127 = vmatpush.msra.mxu0 0.0
    %128 = vmatpush.msra.mxu0 %v102
    %129 = vmatpush.msra.mxu0 %v101
    %130 = vmatpush.msra.mxu0 %v100
    %131 = vmatpush.msra.mxu0 %v99
    %132 = vmatmul.f32.gmra.mxu0 %v105
    %v133 = vpop.f32.mrf.mxu0
    %v134 = vadd.f32 0.0, %v133
    %135 = vmatmul.f32.gmra.mxu0 %v108
    %v136 = vpop.f32.mrf.mxu0
    %v137 = vadd.f32 0.0, %v136
    %138 = vmatmul.f32.gmra.mxu0 %v111
    %v139 = vpop.f32.mrf.mxu0
    %v140 = vadd.f32 0.0, %v139
    %141 = vmatmul.f32.gmra.mxu0 %v114
    %v142 = vpop.f32.mrf.mxu0
    %v143 = vadd.f32 0.0, %v142
    %144 = vdwg.mxu0
    %v145 = vld [vmem:[%s0] sm:$0xff]
    %v146 = vld [vmem:[%s0 + $0x8] sm:$0xff]
    %v147 = vld [vmem:[%s0 + $0x10] sm:$0xff]
    %v148 = vld [vmem:[%s0 + $0x18] sm:$0xff]
    %v149 = vld [vmem:[%s0 + $0x20] sm:$0xff]
    %v150 = vld [vmem:[%s0 + $0x28] sm:$0xff]
    %v151 = vld [vmem:[%s0 + $0x30] sm:$0xff]
    %v152 = vld [vmem:[%s0 + $0x38] sm:$0xff]
    %v153 = vlaneseq
    %v154 = vand.u32 %v153, 127
    %155 = vset.pattern.permute.xlu0 0
    %156 = vperm.xlu0 %155, %v145
    %v157 = vpop.permute.xlu0 %156
    %158 = vset.pattern.permute.xlu0 0
    %159 = vperm.xlu0 %158, %v146
    %v160 = vpop.permute.xlu0 %159
    %161 = vset.pattern.permute.xlu0 0
    %162 = vperm.xlu0 %161, %v147
    %v163 = vpop.permute.xlu0 %162
    %164 = vset.pattern.permute.xlu0 0
    %165 = vperm.xlu0 %164, %v148
    %v166 = vpop.permute.xlu0 %165
    %167 = vset.pattern.permute.xlu0 0
    %168 = vperm.xlu0 %167, %v149
    %v169 = vpop.permute.xlu0 %168
    %170 = vset.pattern.permute.xlu0 0
    %171 = vperm.xlu0 %170, %v150
    %v172 = vpop.permute.xlu0 %171
    %173 = vset.pattern.permute.xlu0 0
    %174 = vperm.xlu0 %173, %v151
    %v175 = vpop.permute.xlu0 %174
    %176 = vset.pattern.permute.xlu0 0
    %177 = vperm.xlu0 %176, %v152
    %v178 = vpop.permute.xlu0 %177
    %vm179 = vcmp.eq.s32.totalorder %v154, %v157
    %vm180 = vcmp.eq.s32.totalorder %v154, %v160
    %vm181 = vcmp.eq.s32.totalorder %v154, %v163
    %vm182 = vcmp.eq.s32.totalorder %v154, %v166
    %vm183 = vcmp.eq.s32.totalorder %v154, %v169
    %vm184 = vcmp.eq.s32.totalorder %v154, %v172
    %vm185 = vcmp.eq.s32.totalorder %v154, %v175
    %vm186 = vcmp.eq.s32.totalorder %v154, %v178
    %v187 = vsel %vm179, 1, 0
    %v188 = vsel %vm180, 1, 0
    %v189 = vsel %vm181, 1, 0
    %v190 = vsel %vm182, 1, 0
    %v191 = vsel %vm183, 1, 0
    %v192 = vsel %vm184, 1, 0
    %v193 = vsel %vm185, 1, 0
    %v194 = vsel %vm186, 1, 0
    %v195 = vcvt.s32.f32 %v187
    %v196 = vcvt.s32.f32 %v188
    %v197 = vcvt.s32.f32 %v189
    %v198 = vcvt.s32.f32 %v190
    %v199 = vcvt.s32.f32 %v191
    %v200 = vcvt.s32.f32 %v192
    %v201 = vcvt.s32.f32 %v193
    %v202 = vcvt.s32.f32 %v194
    %v203 = vld [vmem:[%s5] sm:$0x1]
    %v205 = vperm.slane %v203, 0
    %v208 = vsel %vm103, %v195, 0
    %v211 = vsel %vm103, %v196, 0
    %v214 = vsel %vm103, %v197, 0
    %v217 = vsel %vm103, %v198, 0
    %v220 = vsel %vm103, %v199, 0
    %v223 = vsel %vm103, %v200, 0
    %v226 = vsel %vm103, %v201, 0
    %v229 = vsel %vm103, %v202, 0
    %231 = vmatpush.msra.mxu0 0.0
    %232 = vmatpush.msra.mxu0 0.0
    %233 = vmatpush.msra.mxu0 0.0
    %234 = vmatpush.msra.mxu0 0.0
    %235 = vmatpush.msra.mxu0 0.0
    %236 = vmatpush.msra.mxu0 0.0
    %237 = vmatpush.msra.mxu0 0.0
    %238 = vmatpush.msra.mxu0 0.0
    %239 = vmatpush.msra.mxu0 0.0
    %240 = vmatpush.msra.mxu0 0.0
    %241 = vmatpush.msra.mxu0 0.0
    %242 = vmatpush.msra.mxu0 0.0
    %243 = vmatpush.msra.mxu0 %v143
    %244 = vmatpush.msra.mxu0 %v140
    %245 = vmatpush.msra.mxu0 %v137
    %246 = vmatpush.msra.mxu0 %v134
    %247 = vmatmul.f32.gmra.mxu0 %v208
    %v248 = vpop.f32.mrf.mxu0
    %v249 = vadd.f32 %v205, %v248
    %250 = vmatmul.f32.gmra.mxu0 %v211
    %v251 = vpop.f32.mrf.mxu0
    %v252 = vadd.f32 %v205, %v251
    %253 = vmatmul.f32.gmra.mxu0 %v214
    %v254 = vpop.f32.mrf.mxu0
    %v255 = vadd.f32 %v205, %v254
    %256 = vmatmul.f32.gmra.mxu0 %v217
    %v257 = vpop.f32.mrf.mxu0
    %v258 = vadd.f32 %v205, %v257
    %259 = vmatmul.f32.gmra.mxu0 %v220
    %v260 = vpop.f32.mrf.mxu0
    %v261 = vadd.f32 %v205, %v260
    %262 = vmatmul.f32.gmra.mxu0 %v223
    %v263 = vpop.f32.mrf.mxu0
    %v264 = vadd.f32 %v205, %v263
    %265 = vmatmul.f32.gmra.mxu0 %v226
    %v266 = vpop.f32.mrf.mxu0
    %v267 = vadd.f32 %v205, %v266
    %268 = vmatmul.f32.gmra.mxu0 %v229
    %v269 = vpop.f32.mrf.mxu0
    %v270 = vadd.f32 %v205, %v269
    %271 = vdwg.mxu0
    %v272 = vld [vmem:[%s6] sm:$0xff]
    %v273 = vld [vmem:[%s6 + $0x8] sm:$0xff]
    %v274 = vld [vmem:[%s6 + $0x10] sm:$0xff]
    %v275 = vld [vmem:[%s6 + $0x18] sm:$0xff]
    %v276 = vld [vmem:[%s7] sm:$0xff]
    %v277 = vld [vmem:[%s7 + $0x8] sm:$0xff]
    %v278 = vld [vmem:[%s7 + $0x10] sm:$0xff]
    %v279 = vld [vmem:[%s7 + $0x18] sm:$0xff]
    %v281 = vsel %vm103, %v272, 0
    %v284 = vsel %vm103, %v273, 0
    %v287 = vsel %vm103, %v274, 0
    %v290 = vsel %vm103, %v275, 0
    %292 = vmatpush.msra.mxu0 0.0
    %293 = vmatpush.msra.mxu0 0.0
    %294 = vmatpush.msra.mxu0 0.0
    %295 = vmatpush.msra.mxu0 0.0
    %296 = vmatpush.msra.mxu0 0.0
    %297 = vmatpush.msra.mxu0 0.0
    %298 = vmatpush.msra.mxu0 0.0
    %299 = vmatpush.msra.mxu0 0.0
    %300 = vmatpush.msra.mxu0 0.0
    %301 = vmatpush.msra.mxu0 0.0
    %302 = vmatpush.msra.mxu0 0.0
    %303 = vmatpush.msra.mxu0 0.0
    %304 = vmatpush.msra.mxu0 %v279
    %305 = vmatpush.msra.mxu0 %v278
    %306 = vmatpush.msra.mxu0 %v277
    %307 = vmatpush.msra.mxu0 %v276
    %308 = vmatmul.f32.gmra.mxu0 %v281
    %v309 = vpop.f32.mrf.mxu0
    %v310 = vadd.f32 0.0, %v309
    %311 = vmatmul.f32.gmra.mxu0 %v284
    %v312 = vpop.f32.mrf.mxu0
    %v313 = vadd.f32 0.0, %v312
    %314 = vmatmul.f32.gmra.mxu0 %v287
    %v315 = vpop.f32.mrf.mxu0
    %v316 = vadd.f32 0.0, %v315
    %317 = vmatmul.f32.gmra.mxu0 %v290
    %v318 = vpop.f32.mrf.mxu0
    %v319 = vadd.f32 0.0, %v318
    %320 = vdwg.mxu0
    %v321 = vld [vmem:[%s1] sm:$0xff]
    %v322 = vld [vmem:[%s1 + $0x8] sm:$0xff]
    %v323 = vld [vmem:[%s1 + $0x10] sm:$0xff]
    %v324 = vld [vmem:[%s1 + $0x18] sm:$0xff]
    %v325 = vld [vmem:[%s1 + $0x20] sm:$0xff]
    %v326 = vld [vmem:[%s1 + $0x28] sm:$0xff]
    %v327 = vld [vmem:[%s1 + $0x30] sm:$0xff]
    %v328 = vld [vmem:[%s1 + $0x38] sm:$0xff]
    %329 = vset.pattern.permute.xlu0 0
    %330 = vperm.xlu0 %329, %v321
    %v331 = vpop.permute.xlu0 %330
    %332 = vset.pattern.permute.xlu0 0
    %333 = vperm.xlu0 %332, %v322
    %v334 = vpop.permute.xlu0 %333
    %335 = vset.pattern.permute.xlu0 0
    %336 = vperm.xlu0 %335, %v323
    %v337 = vpop.permute.xlu0 %336
    %338 = vset.pattern.permute.xlu0 0
    %339 = vperm.xlu0 %338, %v324
    %v340 = vpop.permute.xlu0 %339
    %341 = vset.pattern.permute.xlu0 0
    %342 = vperm.xlu0 %341, %v325
    %v343 = vpop.permute.xlu0 %342
    %344 = vset.pattern.permute.xlu0 0
    %345 = vperm.xlu0 %344, %v326
    %v346 = vpop.permute.xlu0 %345
    %347 = vset.pattern.permute.xlu0 0
    %348 = vperm.xlu0 %347, %v327
    %v349 = vpop.permute.xlu0 %348
    %350 = vset.pattern.permute.xlu0 0
    %351 = vperm.xlu0 %350, %v328
    %v352 = vpop.permute.xlu0 %351
    %vm353 = vcmp.eq.s32.totalorder %v154, %v331
    %vm354 = vcmp.eq.s32.totalorder %v154, %v334
    %vm355 = vcmp.eq.s32.totalorder %v154, %v337
    %vm356 = vcmp.eq.s32.totalorder %v154, %v340
    %vm357 = vcmp.eq.s32.totalorder %v154, %v343
    %vm358 = vcmp.eq.s32.totalorder %v154, %v346
    %vm359 = vcmp.eq.s32.totalorder %v154, %v349
    %vm360 = vcmp.eq.s32.totalorder %v154, %v352
    %v361 = vsel %vm353, 1, 0
    %v362 = vsel %vm354, 1, 0
    %v363 = vsel %vm355, 1, 0
    %v364 = vsel %vm356, 1, 0
    %v365 = vsel %vm357, 1, 0
    %v366 = vsel %vm358, 1, 0
    %v367 = vsel %vm359, 1, 0
    %v368 = vsel %vm360, 1, 0
    %v369 = vcvt.s32.f32 %v361
    %v370 = vcvt.s32.f32 %v362
    %v371 = vcvt.s32.f32 %v363
    %v372 = vcvt.s32.f32 %v364
    %v373 = vcvt.s32.f32 %v365
    %v374 = vcvt.s32.f32 %v366
    %v375 = vcvt.s32.f32 %v367
    %v376 = vcvt.s32.f32 %v368
    %v378 = vsel %vm103, %v369, 0
    %v381 = vsel %vm103, %v370, 0
    %v384 = vsel %vm103, %v371, 0
    %v387 = vsel %vm103, %v372, 0
    %v390 = vsel %vm103, %v373, 0
    %v393 = vsel %vm103, %v374, 0
    %v396 = vsel %vm103, %v375, 0
    %v399 = vsel %vm103, %v376, 0
    %401 = vmatpush.msra.mxu0 0.0
    %402 = vmatpush.msra.mxu0 0.0
    %403 = vmatpush.msra.mxu0 0.0
    %404 = vmatpush.msra.mxu0 0.0
    %405 = vmatpush.msra.mxu0 0.0
    %406 = vmatpush.msra.mxu0 0.0
    %407 = vmatpush.msra.mxu0 0.0
    %408 = vmatpush.msra.mxu0 0.0
    %409 = vmatpush.msra.mxu0 0.0
    %410 = vmatpush.msra.mxu0 0.0
    %411 = vmatpush.msra.mxu0 0.0
    %412 = vmatpush.msra.mxu0 0.0
    %413 = vmatpush.msra.mxu0 %v319
    %414 = vmatpush.msra.mxu0 %v316
    %415 = vmatpush.msra.mxu0 %v313
    %416 = vmatpush.msra.mxu0 %v310
    %417 = vmatmul.f32.gmra.mxu0 %v378
    %v418 = vpop.f32.mrf.mxu0
    %v419 = vadd.f32 0.0, %v418
    %420 = vmatmul.f32.gmra.mxu0 %v381
    %v421 = vpop.f32.mrf.mxu0
    %v422 = vadd.f32 0.0, %v421
    %423 = vmatmul.f32.gmra.mxu0 %v384
    %v424 = vpop.f32.mrf.mxu0
    %v425 = vadd.f32 0.0, %v424
    %426 = vmatmul.f32.gmra.mxu0 %v387
    %v427 = vpop.f32.mrf.mxu0
    %v428 = vadd.f32 0.0, %v427
    %429 = vmatmul.f32.gmra.mxu0 %v390
    %v430 = vpop.f32.mrf.mxu0
    %v431 = vadd.f32 0.0, %v430
    %432 = vmatmul.f32.gmra.mxu0 %v393
    %v433 = vpop.f32.mrf.mxu0
    %v434 = vadd.f32 0.0, %v433
    %435 = vmatmul.f32.gmra.mxu0 %v396
    %v436 = vpop.f32.mrf.mxu0
    %v437 = vadd.f32 0.0, %v436
    %438 = vmatmul.f32.gmra.mxu0 %v399
    %v439 = vpop.f32.mrf.mxu0
    %v440 = vadd.f32 0.0, %v439
    %441 = vdwg.mxu0
    %v442 = vld [vmem:[%s4] sm:$0xff]
    %v443 = vld [vmem:[%s4 + $0x8] sm:$0xff]
    %v444 = vld [vmem:[%s4 + $0x10] sm:$0xff]
    %v445 = vld [vmem:[%s4 + $0x18] sm:$0xff]
    %v446 = vld [vmem:[#allocation6] sm:$0xff]
    %v447 = vld [vmem:[#allocation6 + $0x8] sm:$0xff]
    %v448 = vld [vmem:[#allocation6 + $0x10] sm:$0xff]
    %v449 = vld [vmem:[#allocation6 + $0x18] sm:$0xff]
    %v451 = vsel %vm103, 0.0, 0
    %453 = vmatpush.msra.mxu0 0.0
    %454 = vmatpush.msra.mxu0 0.0
    %455 = vmatpush.msra.mxu0 0.0
    %456 = vmatpush.msra.mxu0 0.0
    %457 = vmatpush.msra.mxu0 0.0
    %458 = vmatpush.msra.mxu0 0.0
    %459 = vmatpush.msra.mxu0 0.0
    %460 = vmatpush.msra.mxu0 0.0
    %461 = vmatpush.msra.mxu0 0.0
    %462 = vmatpush.msra.mxu0 0.0
    %463 = vmatpush.msra.mxu0 0.0
    %464 = vmatpush.msra.mxu0 0.0
    %465 = vmatpush.msra.mxu0 %v445
    %466 = vmatpush.msra.mxu0 %v444
    %467 = vmatpush.msra.mxu0 %v443
    %468 = vmatpush.msra.mxu0 %v442
    %469 = vmatmul.f32.gmra.mxu0 %v451
    %v470 = vpop.f32.mrf.mxu0
    %v471 = vadd.f32 0.0, %v470
    %472 = vdwg.mxu0
    %v473 = vadd.f32 %v249, %v471
    %v474 = vtanh.pop %v473
    %v476 = vsel %vm103, %v474, 0
    %478 = vmatpush.msra.mxu0 0.0
    %479 = vmatpush.msra.mxu0 0.0
    %480 = vmatpush.msra.mxu0 0.0
    %481 = vmatpush.msra.mxu0 0.0
    %482 = vmatpush.msra.mxu0 0.0
    %483 = vmatpush.msra.mxu0 0.0
    %484 = vmatpush.msra.mxu0 0.0
    %485 = vmatpush.msra.mxu0 0.0
    %486 = vmatpush.msra.mxu0 0.0
    %487 = vmatpush.msra.mxu0 0.0
    %488 = vmatpush.msra.mxu0 0.0
    %489 = vmatpush.msra.mxu0 0.0
    %490 = vmatpush.msra.mxu0 %v445
    %491 = vmatpush.msra.mxu0 %v444
    %492 = vmatpush.msra.mxu0 %v443
    %493 = vmatpush.msra.mxu0 %v442
    %494 = vmatmul.f32.gmra.mxu0 %v476
    %v495 = vpop.f32.mrf.mxu0
    %v496 = vadd.f32 0.0, %v495
    %497 = vdwg.mxu0
    %v498 = vadd.f32 %v252, %v496
    %v499 = vtanh.pop %v498
    %v501 = vsel %vm103, %v499, 0
    %503 = vmatpush.msra.mxu0 0.0
    %504 = vmatpush.msra.mxu0 0.0
    %505 = vmatpush.msra.mxu0 0.0
    %506 = vmatpush.msra.mxu0 0.0
    %507 = vmatpush.msra.mxu0 0.0
    %508 = vmatpush.msra.mxu0 0.0
    %509 = vmatpush.msra.mxu0 0.0
    %510 = vmatpush.msra.mxu0 0.0
    %511 = vmatpush.msra.mxu0 0.0
    %512 = vmatpush.msra.mxu0 0.0
    %513 = vmatpush.msra.mxu0 0.0
    %514 = vmatpush.msra.mxu0 0.0
    %515 = vmatpush.msra.mxu0 %v445
    %516 = vmatpush.msra.mxu0 %v444
    %517 = vmatpush.msra.mxu0 %v443
    %518 = vmatpush.msra.mxu0 %v442
    %519 = vmatmul.f32.gmra.mxu0 %v501
    %v520 = vpop.f32.mrf.mxu0
    %v521 = vadd.f32 0.0, %v520
    %522 = vdwg.mxu0
    %v523 = vadd.f32 %v255, %v521
    %v524 = vtanh.pop %v523
    %v526 = vsel %vm103, %v524, 0
    %528 = vmatpush.msra.mxu0 0.0
    %529 = vmatpush.msra.mxu0 0.0
    %530 = vmatpush.msra.mxu0 0.0
    %531 = vmatpush.msra.mxu0 0.0
    %532 = vmatpush.msra.mxu0 0.0
    %533 = vmatpush.msra.mxu0 0.0
    %534 = vmatpush.msra.mxu0 0.0
    %535 = vmatpush.msra.mxu0 0.0
    %536 = vmatpush.msra.mxu0 0.0
    %537 = vmatpush.msra.mxu0 0.0
    %538 = vmatpush.msra.mxu0 0.0
    %539 = vmatpush.msra.mxu0 0.0
    %540 = vmatpush.msra.mxu0 %v445
    %541 = vmatpush.msra.mxu0 %v444
    %542 = vmatpush.msra.mxu0 %v443
    %543 = vmatpush.msra.mxu0 %v442
    %544 = vmatmul.f32.gmra.mxu0 %v526
    %v545 = vpop.f32.mrf.mxu0
    %v546 = vadd.f32 0.0, %v545
    %547 = vdwg.mxu0
    %v548 = vadd.f32 %v258, %v546
    %v549 = vtanh.pop %v548
    %v551 = vsel %vm103, %v549, 0
    %553 = vmatpush.msra.mxu0 0.0
    %554 = vmatpush.msra.mxu0 0.0
    %555 = vmatpush.msra.mxu0 0.0
    %556 = vmatpush.msra.mxu0 0.0
    %557 = vmatpush.msra.mxu0 0.0
    %558 = vmatpush.msra.mxu0 0.0
    %559 = vmatpush.msra.mxu0 0.0
    %560 = vmatpush.msra.mxu0 0.0
    %561 = vmatpush.msra.mxu0 0.0
    %562 = vmatpush.msra.mxu0 0.0
    %563 = vmatpush.msra.mxu0 0.0
    %564 = vmatpush.msra.mxu0 0.0
    %565 = vmatpush.msra.mxu0 %v445
    %566 = vmatpush.msra.mxu0 %v444
    %567 = vmatpush.msra.mxu0 %v443
    %568 = vmatpush.msra.mxu0 %v442
    %569 = vmatmul.f32.gmra.mxu0 %v551
    %v570 = vpop.f32.mrf.mxu0
    %v571 = vadd.f32 0.0, %v570
    %572 = vdwg.mxu0
    %v573 = vadd.f32 %v261, %v571
    %v574 = vtanh.pop %v573
    %v576 = vsel %vm103, %v574, 0
    %578 = vmatpush.msra.mxu0 0.0
    %579 = vmatpush.msra.mxu0 0.0
    %580 = vmatpush.msra.mxu0 0.0
    %581 = vmatpush.msra.mxu0 0.0
    %582 = vmatpush.msra.mxu0 0.0
    %583 = vmatpush.msra.mxu0 0.0
    %584 = vmatpush.msra.mxu0 0.0
    %585 = vmatpush.msra.mxu0 0.0
    %586 = vmatpush.msra.mxu0 0.0
    %587 = vmatpush.msra.mxu0 0.0
    %588 = vmatpush.msra.mxu0 0.0
    %589 = vmatpush.msra.mxu0 0.0
    %590 = vmatpush.msra.mxu0 %v445
    %591 = vmatpush.msra.mxu0 %v444
    %592 = vmatpush.msra.mxu0 %v443
    %593 = vmatpush.msra.mxu0 %v442
    %594 = vmatmul.f32.gmra.mxu0 %v576
    %v595 = vpop.f32.mrf.mxu0
    %v596 = vadd.f32 0.0, %v595
    %597 = vdwg.mxu0
    %v598 = vadd.f32 %v264, %v596
    %v599 = vtanh.pop %v598
    %v601 = vsel %vm103, %v599, 0
    %603 = vmatpush.msra.mxu0 0.0
    %604 = vmatpush.msra.mxu0 0.0
    %605 = vmatpush.msra.mxu0 0.0
    %606 = vmatpush.msra.mxu0 0.0
    %607 = vmatpush.msra.mxu0 0.0
    %608 = vmatpush.msra.mxu0 0.0
    %609 = vmatpush.msra.mxu0 0.0
    %610 = vmatpush.msra.mxu0 0.0
    %611 = vmatpush.msra.mxu0 0.0
    %612 = vmatpush.msra.mxu0 0.0
    %613 = vmatpush.msra.mxu0 0.0
    %614 = vmatpush.msra.mxu0 0.0
    %615 = vmatpush.msra.mxu0 %v445
    %616 = vmatpush.msra.mxu0 %v444
    %617 = vmatpush.msra.mxu0 %v443
    %618 = vmatpush.msra.mxu0 %v442
    %619 = vmatmul.f32.gmra.mxu0 %v601
    %v620 = vpop.f32.mrf.mxu0
    %v621 = vadd.f32 0.0, %v620
    %622 = vdwg.mxu0
    %v623 = vadd.f32 %v267, %v621
    %v624 = vtanh.pop %v623
    %v626 = vsel %vm103, %v624, 0
    %628 = vmatpush.msra.mxu0 0.0
    %629 = vmatpush.msra.mxu0 0.0
    %630 = vmatpush.msra.mxu0 0.0
    %631 = vmatpush.msra.mxu0 0.0
    %632 = vmatpush.msra.mxu0 0.0
    %633 = vmatpush.msra.mxu0 0.0
    %634 = vmatpush.msra.mxu0 0.0
    %635 = vmatpush.msra.mxu0 0.0
    %636 = vmatpush.msra.mxu0 0.0
    %637 = vmatpush.msra.mxu0 0.0
    %638 = vmatpush.msra.mxu0 0.0
    %639 = vmatpush.msra.mxu0 0.0
    %640 = vmatpush.msra.mxu0 %v445
    %641 = vmatpush.msra.mxu0 %v444
    %642 = vmatpush.msra.mxu0 %v443
    %643 = vmatpush.msra.mxu0 %v442
    %644 = vmatmul.f32.gmra.mxu0 %v626
    %v645 = vpop.f32.mrf.mxu0
    %v646 = vadd.f32 0.0, %v645
    %647 = vdwg.mxu0
    %v648 = vadd.f32 %v270, %v646
    %v649 = vtanh.pop %v648
    %v650 = vld [vmem:[#allocation3] sm:$0xff]
    %v651 = vld [vmem:[#allocation3 + $0x8] sm:$0xff]
    %v652 = vld [vmem:[#allocation3 + $0x10] sm:$0xff]
    %v653 = vld [vmem:[#allocation3 + $0x18] sm:$0xff]
    %v654 = vld [vmem:[%s10] sm:$0x1]
    %v656 = vperm.slane %v654, 0
    %v659 = vsel %vm103, %v649, 0
    %661 = vmatpush.msra.mxu0 0.0
    %662 = vmatpush.msra.mxu0 0.0
    %663 = vmatpush.msra.mxu0 0.0
    %664 = vmatpush.msra.mxu0 0.0
    %665 = vmatpush.msra.mxu0 0.0
    %666 = vmatpush.msra.mxu0 0.0
    %667 = vmatpush.msra.mxu0 0.0
    %668 = vmatpush.msra.mxu0 0.0
    %669 = vmatpush.msra.mxu0 0.0
    %670 = vmatpush.msra.mxu0 0.0
    %671 = vmatpush.msra.mxu0 0.0
    %672 = vmatpush.msra.mxu0 0.0
    %673 = vmatpush.msra.mxu0 %v653
    %674 = vmatpush.msra.mxu0 %v652
    %675 = vmatpush.msra.mxu0 %v651
    %676 = vmatpush.msra.mxu0 %v650
    %677 = vmatmul.f32.gmra.mxu0 %v659
    %v678 = vpop.f32.mrf.mxu0
    %v679 = vadd.f32 %v656, %v678
    %680 = vdwg.mxu0
    %v681 = vadd.f32 %v419, %v679
    %682 = vmatpush.msra.mxu0 0.0
    %683 = vmatpush.msra.mxu0 0.0
    %684 = vmatpush.msra.mxu0 0.0
    %685 = vmatpush.msra.mxu0 0.0
    %686 = vmatpush.msra.mxu0 0.0
    %687 = vmatpush.msra.mxu0 0.0
    %688 = vmatpush.msra.mxu0 0.0
    %689 = vmatpush.msra.mxu0 0.0
    %690 = vmatpush.msra.mxu0 0.0
    %691 = vmatpush.msra.mxu0 0.0
    %692 = vmatpush.msra.mxu0 0.0
    %693 = vmatpush.msra.mxu0 0.0
    %694 = vmatpush.msra.mxu0 %v449
    %695 = vmatpush.msra.mxu0 %v448
    %696 = vmatpush.msra.mxu0 %v447
    %697 = vmatpush.msra.mxu0 %v446
    %698 = vmatmul.f32.gmra.mxu0 %v659
    %v699 = vpop.f32.mrf.mxu0
    %v700 = vadd.f32 0.0, %v699
    %701 = vdwg.mxu0
    %v702 = vadd.f32 %v681, %v700
    %v703 = vtanh.pop %v702
    %704 = vst.msk [vmem:[#allocation2] sm:$0xff] %vm103, %v703
    %v705 = vadd.f32 %v422, %v679
    %v707 = vsel %vm103, %v703, 0
    %709 = vmatpush.msra.mxu0 0.0
    %710 = vmatpush.msra.mxu0 0.0
    %711 = vmatpush.msra.mxu0 0.0
    %712 = vmatpush.msra.mxu0 0.0
    %713 = vmatpush.msra.mxu0 0.0
    %714 = vmatpush.msra.mxu0 0.0
    %715 = vmatpush.msra.mxu0 0.0
    %716 = vmatpush.msra.mxu0 0.0
    %717 = vmatpush.msra.mxu0 0.0
    %718 = vmatpush.msra.mxu0 0.0
    %719 = vmatpush.msra.mxu0 0.0
    %720 = vmatpush.msra.mxu0 0.0
    %721 = vmatpush.msra.mxu0 %v449
    %722 = vmatpush.msra.mxu0 %v448
    %723 = vmatpush.msra.mxu0 %v447
    %724 = vmatpush.msra.mxu0 %v446
    %725 = vmatmul.f32.gmra.mxu0 %v707
    %v726 = vpop.f32.mrf.mxu0
    %v727 = vadd.f32 0.0, %v726
    %728 = vdwg.mxu0
    %v729 = vadd.f32 %v705, %v727
    %v730 = vtanh.pop %v729
    %731 = vst.msk [vmem:[#allocation2 + $0x8] sm:$0xff] %vm103, %v730
    %v732 = vadd.f32 %v425, %v679
    %v734 = vsel %vm103, %v730, 0
    %736 = vmatpush.msra.mxu0 0.0
    %737 = vmatpush.msra.mxu0 0.0
    %738 = vmatpush.msra.mxu0 0.0
    %739 = vmatpush.msra.mxu0 0.0
    %740 = vmatpush.msra.mxu0 0.0
    %741 = vmatpush.msra.mxu0 0.0
    %742 = vmatpush.msra.mxu0 0.0
    %743 = vmatpush.msra.mxu0 0.0
    %744 = vmatpush.msra.mxu0 0.0
    %745 = vmatpush.msra.mxu0 0.0
    %746 = vmatpush.msra.mxu0 0.0
    %747 = vmatpush.msra.mxu0 0.0
    %748 = vmatpush.msra.mxu0 %v449
    %749 = vmatpush.msra.mxu0 %v448
    %750 = vmatpush.msra.mxu0 %v447
    %751 = vmatpush.msra.mxu0 %v446
    %752 = vmatmul.f32.gmra.mxu0 %v734
    %v753 = vpop.f32.mrf.mxu0
    %v754 = vadd.f32 0.0, %v753
    %755 = vdwg.mxu0
    %v756 = vadd.f32 %v732, %v754
    %v757 = vtanh.pop %v756
    %758 = vst.msk [vmem:[#allocation2 + $0x10] sm:$0xff] %vm103, %v757
    %v759 = vadd.f32 %v428, %v679
    %v761 = vsel %vm103, %v757, 0
    %763 = vmatpush.msra.mxu0 0.0
    %764 = vmatpush.msra.mxu0 0.0
    %765 = vmatpush.msra.mxu0 0.0
    %766 = vmatpush.msra.mxu0 0.0
    %767 = vmatpush.msra.mxu0 0.0
    %768 = vmatpush.msra.mxu0 0.0
    %769 = vmatpush.msra.mxu0 0.0
    %770 = vmatpush.msra.mxu0 0.0
    %771 = vmatpush.msra.mxu0 0.0
    %772 = vmatpush.msra.mxu0 0.0
    %773 = vmatpush.msra.mxu0 0.0
    %774 = vmatpush.msra.mxu0 0.0
    %775 = vmatpush.msra.mxu0 %v449
    %776 = vmatpush.msra.mxu0 %v448
    %777 = vmatpush.msra.mxu0 %v447
    %778 = vmatpush.msra.mxu0 %v446
    %779 = vmatmul.f32.gmra.mxu0 %v761
    %v780 = vpop.f32.mrf.mxu0
    %v781 = vadd.f32 0.0, %v780
    %782 = vdwg.mxu0
    %v783 = vadd.f32 %v759, %v781
    %v784 = vtanh.pop %v783
    %785 = vst.msk [vmem:[#allocation2 + $0x18] sm:$0xff] %vm103, %v784
    %v786 = vadd.f32 %v431, %v679
    %v788 = vsel %vm103, %v784, 0
    %790 = vmatpush.msra.mxu0 0.0
    %791 = vmatpush.msra.mxu0 0.0
    %792 = vmatpush.msra.mxu0 0.0
    %793 = vmatpush.msra.mxu0 0.0
    %794 = vmatpush.msra.mxu0 0.0
    %795 = vmatpush.msra.mxu0 0.0
    %796 = vmatpush.msra.mxu0 0.0
    %797 = vmatpush.msra.mxu0 0.0
    %798 = vmatpush.msra.mxu0 0.0
    %799 = vmatpush.msra.mxu0 0.0
    %800 = vmatpush.msra.mxu0 0.0
    %801 = vmatpush.msra.mxu0 0.0
    %802 = vmatpush.msra.mxu0 %v449
    %803 = vmatpush.msra.mxu0 %v448
    %804 = vmatpush.msra.mxu0 %v447
    %805 = vmatpush.msra.mxu0 %v446
    %806 = vmatmul.f32.gmra.mxu0 %v788
    %v807 = vpop.f32.mrf.mxu0
    %v808 = vadd.f32 0.0, %v807
    %809 = vdwg.mxu0
    %v810 = vadd.f32 %v786, %v808
    %v811 = vtanh.pop %v810
    %812 = vst.msk [vmem:[#allocation2 + $0x20] sm:$0xff] %vm103, %v811
    %v813 = vadd.f32 %v434, %v679
    %v815 = vsel %vm103, %v811, 0
    %817 = vmatpush.msra.mxu0 0.0
    %818 = vmatpush.msra.mxu0 0.0
    %819 = vmatpush.msra.mxu0 0.0
    %820 = vmatpush.msra.mxu0 0.0
    %821 = vmatpush.msra.mxu0 0.0
    %822 = vmatpush.msra.mxu0 0.0
    %823 = vmatpush.msra.mxu0 0.0
    %824 = vmatpush.msra.mxu0 0.0
    %825 = vmatpush.msra.mxu0 0.0
    %826 = vmatpush.msra.mxu0 0.0
    %827 = vmatpush.msra.mxu0 0.0
    %828 = vmatpush.msra.mxu0 0.0
    %829 = vmatpush.msra.mxu0 %v449
    %830 = vmatpush.msra.mxu0 %v448
    %831 = vmatpush.msra.mxu0 %v447
    %832 = vmatpush.msra.mxu0 %v446
    %833 = vmatmul.f32.gmra.mxu0 %v815
    %v834 = vpop.f32.mrf.mxu0
    %v835 = vadd.f32 0.0, %v834
    %836 = vdwg.mxu0
    %v837 = vadd.f32 %v813, %v835
    %v838 = vtanh.pop %v837
    %839 = vst.msk [vmem:[#allocation2 + $0x28] sm:$0xff] %vm103, %v838
    %v840 = vadd.f32 %v437, %v679
    %v842 = vsel %vm103, %v838, 0
    %844 = vmatpush.msra.mxu0 0.0
    %845 = vmatpush.msra.mxu0 0.0
    %846 = vmatpush.msra.mxu0 0.0
    %847 = vmatpush.msra.mxu0 0.0
    %848 = vmatpush.msra.mxu0 0.0
    %849 = vmatpush.msra.mxu0 0.0
    %850 = vmatpush.msra.mxu0 0.0
    %851 = vmatpush.msra.mxu0 0.0
    %852 = vmatpush.msra.mxu0 0.0
    %853 = vmatpush.msra.mxu0 0.0
    %854 = vmatpush.msra.mxu0 0.0
    %855 = vmatpush.msra.mxu0 0.0
    %856 = vmatpush.msra.mxu0 %v449
    %857 = vmatpush.msra.mxu0 %v448
    %858 = vmatpush.msra.mxu0 %v447
    %859 = vmatpush.msra.mxu0 %v446
    %860 = vmatmul.f32.gmra.mxu0 %v842
    %v861 = vpop.f32.mrf.mxu0
    %v862 = vadd.f32 0.0, %v861
    %863 = vdwg.mxu0
    %v864 = vadd.f32 %v840, %v862
    %v865 = vtanh.pop %v864
    %866 = vst.msk [vmem:[#allocation2 + $0x30] sm:$0xff] %vm103, %v865
    %v867 = vadd.f32 %v440, %v679
    %v869 = vsel %vm103, %v865, 0
    %871 = vmatpush.msra.mxu0 0.0
    %872 = vmatpush.msra.mxu0 0.0
    %873 = vmatpush.msra.mxu0 0.0
    %874 = vmatpush.msra.mxu0 0.0
    %875 = vmatpush.msra.mxu0 0.0
    %876 = vmatpush.msra.mxu0 0.0
    %877 = vmatpush.msra.mxu0 0.0
    %878 = vmatpush.msra.mxu0 0.0
    %879 = vmatpush.msra.mxu0 0.0
    %880 = vmatpush.msra.mxu0 0.0
    %881 = vmatpush.msra.mxu0 0.0
    %882 = vmatpush.msra.mxu0 0.0
    %883 = vmatpush.msra.mxu0 %v449
    %884 = vmatpush.msra.mxu0 %v448
    %885 = vmatpush.msra.mxu0 %v447
    %886 = vmatpush.msra.mxu0 %v446
    %887 = vmatmul.f32.gmra.mxu0 %v869
    %v888 = vpop.f32.mrf.mxu0
    %v889 = vadd.f32 0.0, %v888
    %890 = vdwg.mxu0
    %v891 = vadd.f32 %v867, %v889
    %v892 = vtanh.pop %v891
    %893 = vst.msk [vmem:[#allocation2 + $0x38] sm:$0xff] %vm103, %v892
    %v894 = vld [vmem:[#allocation2] sm:$0xff]
    %v895 = vld [vmem:[#allocation2 + $0x8] sm:$0xff]
    %v896 = vld [vmem:[#allocation2 + $0x10] sm:$0xff]
    %v897 = vld [vmem:[#allocation2 + $0x18] sm:$0xff]
    %v898 = vld [vmem:[#allocation2 + $0x20] sm:$0xff]
    %v899 = vld [vmem:[#allocation2 + $0x28] sm:$0xff]
    %v900 = vld [vmem:[#allocation2 + $0x30] sm:$0xff]
    %v901 = vld [vmem:[#allocation2 + $0x38] sm:$0xff]
    %v902 = vld [vmem:[#allocation8] sm:$0xff]
    %v903 = vld [vmem:[#allocation8 + $0x8] sm:$0xff]
    %v904 = vld [vmem:[#allocation8 + $0x10] sm:$0xff]
    %v905 = vld [vmem:[#allocation8 + $0x18] sm:$0xff]
    %v906 = vld [vmem:[%s12] sm:$0x1]
    %v908 = vperm.slane %v906, 0
    %v911 = vsel %vm103, %v894, 0
    %v914 = vsel %vm103, %v895, 0
    %v917 = vsel %vm103, %v896, 0
    %v920 = vsel %vm103, %v897, 0
    %v923 = vsel %vm103, %v898, 0
    %v926 = vsel %vm103, %v899, 0
    %v929 = vsel %vm103, %v900, 0
    %v932 = vsel %vm103, %v901, 0
    %934 = vmatpush.msra.mxu0 0.0
    %935 = vmatpush.msra.mxu0 0.0
    %936 = vmatpush.msra.mxu0 0.0
    %937 = vmatpush.msra.mxu0 0.0
    %938 = vmatpush.msra.mxu0 0.0
    %939 = vmatpush.msra.mxu0 0.0
    %940 = vmatpush.msra.mxu0 0.0
    %941 = vmatpush.msra.mxu0 0.0
    %942 = vmatpush.msra.mxu0 0.0
    %943 = vmatpush.msra.mxu0 0.0
    %944 = vmatpush.msra.mxu0 0.0
    %945 = vmatpush.msra.mxu0 0.0
    %946 = vmatpush.msra.mxu0 %v905
    %947 = vmatpush.msra.mxu0 %v904
    %948 = vmatpush.msra.mxu0 %v903
    %949 = vmatpush.msra.mxu0 %v902
    %950 = vmatmul.f32.gmra.mxu0 %v911
    %v951 = vpop.f32.mrf.mxu0
    %v952 = vadd.f32 %v908, %v951
    %953 = vmatmul.f32.gmra.mxu0 %v914
    %v954 = vpop.f32.mrf.mxu0
    %v955 = vadd.f32 %v908, %v954
    %956 = vmatmul.f32.gmra.mxu0 %v917
    %v957 = vpop.f32.mrf.mxu0
    %v958 = vadd.f32 %v908, %v957
    %959 = vmatmul.f32.gmra.mxu0 %v920
    %v960 = vpop.f32.mrf.mxu0
    %v961 = vadd.f32 %v908, %v960
    %962 = vmatmul.f32.gmra.mxu0 %v923
    %v963 = vpop.f32.mrf.mxu0
    %v964 = vadd.f32 %v908, %v963
    %965 = vmatmul.f32.gmra.mxu0 %v926
    %v966 = vpop.f32.mrf.mxu0
    %v967 = vadd.f32 %v908, %v966
    %968 = vmatmul.f32.gmra.mxu0 %v929
    %v969 = vpop.f32.mrf.mxu0
    %v970 = vadd.f32 %v908, %v969
    %971 = vmatmul.f32.gmra.mxu0 %v932
    %v972 = vpop.f32.mrf.mxu0
    %v973 = vadd.f32 %v908, %v972
    %974 = vdwg.mxu0
    %v976 = vrot.slane %v952, 1
    %v977 = vrot.slane %v952, 2
    %v978 = vrot.slane %v952, 3
    %v979 = vrot.slane %v952, 4
    %v980 = vrot.slane %v952, 5
    %v981 = vrot.slane %v952, 6
    %v982 = vrot.slane %v952, 7
    %990 = vst [vmem:[#allocation9] sm:$0x1] %v952
    %991 = vst [vmem:[#allocation9 + $0x8] sm:$0x1] %v976
    %992 = vst [vmem:[#allocation9 + $0x10] sm:$0x1] %v977
    %993 = vst [vmem:[#allocation9 + $0x18] sm:$0x1] %v978
    %994 = vst [vmem:[#allocation9 + $0x20] sm:$0x1] %v979
    %995 = vst [vmem:[#allocation9 + $0x28] sm:$0x1] %v980
    %996 = vst [vmem:[#allocation9 + $0x30] sm:$0x1] %v981
    %997 = vst [vmem:[#allocation9 + $0x38] sm:$0x1] %v982
    %v999 = vrot.slane %v955, 1
    %v1000 = vrot.slane %v955, 2
    %v1001 = vrot.slane %v955, 3
    %v1002 = vrot.slane %v955, 4
    %v1003 = vrot.slane %v955, 5
    %v1004 = vrot.slane %v955, 6
    %v1005 = vrot.slane %v955, 7
    %1013 = vst [vmem:[#allocation9 + $0x1] sm:$0x1] %v955
    %1014 = vst [vmem:[#allocation9 + $0x9] sm:$0x1] %v999
    %1015 = vst [vmem:[#allocation9 + $0x11] sm:$0x1] %v1000
    %1016 = vst [vmem:[#allocation9 + $0x19] sm:$0x1] %v1001
    %1017 = vst [vmem:[#allocation9 + $0x21] sm:$0x1] %v1002
    %1018 = vst [vmem:[#allocation9 + $0x29] sm:$0x1] %v1003
    %1019 = vst [vmem:[#allocation9 + $0x31] sm:$0x1] %v1004
    %1020 = vst [vmem:[#allocation9 + $0x39] sm:$0x1] %v1005
    %v1022 = vrot.slane %v958, 1
    %v1023 = vrot.slane %v958, 2
    %v1024 = vrot.slane %v958, 3
    %v1025 = vrot.slane %v958, 4
    %v1026 = vrot.slane %v958, 5
    %v1027 = vrot.slane %v958, 6
    %v1028 = vrot.slane %v958, 7
    %1036 = vst [vmem:[#allocation9 + $0x2] sm:$0x1] %v958
    %1037 = vst [vmem:[#allocation9 + $0xa] sm:$0x1] %v1022
    %1038 = vst [vmem:[#allocation9 + $0x12] sm:$0x1] %v1023
    %1039 = vst [vmem:[#allocation9 + $0x1a] sm:$0x1] %v1024
    %1040 = vst [vmem:[#allocation9 + $0x22] sm:$0x1] %v1025
    %1041 = vst [vmem:[#allocation9 + $0x2a] sm:$0x1] %v1026
    %1042 = vst [vmem:[#allocation9 + $0x32] sm:$0x1] %v1027
    %1043 = vst [vmem:[#allocation9 + $0x3a] sm:$0x1] %v1028
    %v1045 = vrot.slane %v961, 1
    %v1046 = vrot.slane %v961, 2
    %v1047 = vrot.slane %v961, 3
    %v1048 = vrot.slane %v961, 4
    %v1049 = vrot.slane %v961, 5
    %v1050 = vrot.slane %v961, 6
    %v1051 = vrot.slane %v961, 7
    %1059 = vst [vmem:[#allocation9 + $0x3] sm:$0x1] %v961
    %1060 = vst [vmem:[#allocation9 + $0xb] sm:$0x1] %v1045
    %1061 = vst [vmem:[#allocation9 + $0x13] sm:$0x1] %v1046
    %1062 = vst [vmem:[#allocation9 + $0x1b] sm:$0x1] %v1047
    %1063 = vst [vmem:[#allocation9 + $0x23] sm:$0x1] %v1048
    %1064 = vst [vmem:[#allocation9 + $0x2b] sm:$0x1] %v1049
    %1065 = vst [vmem:[#allocation9 + $0x33] sm:$0x1] %v1050
    %1066 = vst [vmem:[#allocation9 + $0x3b] sm:$0x1] %v1051
    %v1068 = vrot.slane %v964, 1
    %v1069 = vrot.slane %v964, 2
    %v1070 = vrot.slane %v964, 3
    %v1071 = vrot.slane %v964, 4
    %v1072 = vrot.slane %v964, 5
    %v1073 = vrot.slane %v964, 6
    %v1074 = vrot.slane %v964, 7
    %1082 = vst [vmem:[#allocation9 + $0x4] sm:$0x1] %v964
    %1083 = vst [vmem:[#allocation9 + $0xc] sm:$0x1] %v1068
    %1084 = vst [vmem:[#allocation9 + $0x14] sm:$0x1] %v1069
    %1085 = vst [vmem:[#allocation9 + $0x1c] sm:$0x1] %v1070
    %1086 = vst [vmem:[#allocation9 + $0x24] sm:$0x1] %v1071
    %1087 = vst [vmem:[#allocation9 + $0x2c] sm:$0x1] %v1072
    %1088 = vst [vmem:[#allocation9 + $0x34] sm:$0x1] %v1073
    %1089 = vst [vmem:[#allocation9 + $0x3c] sm:$0x1] %v1074
    %v1091 = vrot.slane %v967, 1
    %v1092 = vrot.slane %v967, 2
    %v1093 = vrot.slane %v967, 3
    %v1094 = vrot.slane %v967, 4
    %v1095 = vrot.slane %v967, 5
    %v1096 = vrot.slane %v967, 6
    %v1097 = vrot.slane %v967, 7
    %1105 = vst [vmem:[#allocation9 + $0x5] sm:$0x1] %v967
    %1106 = vst [vmem:[#allocation9 + $0xd] sm:$0x1] %v1091
    %1107 = vst [vmem:[#allocation9 + $0x15] sm:$0x1] %v1092
    %1108 = vst [vmem:[#allocation9 + $0x1d] sm:$0x1] %v1093
    %1109 = vst [vmem:[#allocation9 + $0x25] sm:$0x1] %v1094
    %1110 = vst [vmem:[#allocation9 + $0x2d] sm:$0x1] %v1095
    %1111 = vst [vmem:[#allocation9 + $0x35] sm:$0x1] %v1096
    %1112 = vst [vmem:[#allocation9 + $0x3d] sm:$0x1] %v1097
    %v1114 = vrot.slane %v970, 1
    %v1115 = vrot.slane %v970, 2
    %v1116 = vrot.slane %v970, 3
    %v1117 = vrot.slane %v970, 4
    %v1118 = vrot.slane %v970, 5
    %v1119 = vrot.slane %v970, 6
    %v1120 = vrot.slane %v970, 7
    %1128 = vst [vmem:[#allocation9 + $0x6] sm:$0x1] %v970
    %1129 = vst [vmem:[#allocation9 + $0xe] sm:$0x1] %v1114
    %1130 = vst [vmem:[#allocation9 + $0x16] sm:$0x1] %v1115
    %1131 = vst [vmem:[#allocation9 + $0x1e] sm:$0x1] %v1116
    %1132 = vst [vmem:[#allocation9 + $0x26] sm:$0x1] %v1117
    %1133 = vst [vmem:[#allocation9 + $0x2e] sm:$0x1] %v1118
    %1134 = vst [vmem:[#allocation9 + $0x36] sm:$0x1] %v1119
    %1135 = vst [vmem:[#allocation9 + $0x3e] sm:$0x1] %v1120
    %v1137 = vrot.slane %v973, 1
    %v1138 = vrot.slane %v973, 2
    %v1139 = vrot.slane %v973, 3
    %v1140 = vrot.slane %v973, 4
    %v1141 = vrot.slane %v973, 5
    %v1142 = vrot.slane %v973, 6
    %v1143 = vrot.slane %v973, 7
    %1151 = vst [vmem:[#allocation9 + $0x7] sm:$0x1] %v973
    %1152 = vst [vmem:[#allocation9 + $0xf] sm:$0x1] %v1137
    %1153 = vst [vmem:[#allocation9 + $0x17] sm:$0x1] %v1138
    %1154 = vst [vmem:[#allocation9 + $0x1f] sm:$0x1] %v1139
    %1155 = vst [vmem:[#allocation9 + $0x27] sm:$0x1] %v1140
    %1156 = vst [vmem:[#allocation9 + $0x2f] sm:$0x1] %v1141
    %1157 = vst [vmem:[#allocation9 + $0x37] sm:$0x1] %v1142
    %1158 = vst [vmem:[#allocation9 + $0x3f] sm:$0x1] %v1143
    %1159 = vst.msk [vmem:[#allocation10] sm:$0xff] %vm103, %v892
    // Predicated region
    $region66: #{encoder_decoder_forward.1} parent=1 // pred_check
      _
    $region67: #{encoder_decoder_forward.1} parent=1 // pred_check_branch
      %1161 = sbr.rel (0) target = $region69
    $region68: #{encoder_decoder_forward.1} parent=1 // pred_region
      %1163 = vsyncadd [#allocation5], 0
      %s1164 = sshll.u32 [#allocation9], 4
      %s1165 = int_to_ptr.vmem [resolvable:$true] %s1164
      %s1166 = sshll.u32 %s13, 4
      %s1167 = int_to_ptr.hbm [resolvable:$true] %s1166
      %1172 = dma.vmem_to_hbm [thread:$0]  %s1165, 1024, %s1167, [#allocation5], 128, 128, 8
    $region69: #{encoder_decoder_forward.1} parent=1 // pred_fallthru
      _
    // Predicated region
    $region70: #{encoder_decoder_forward.1} parent=1 // pred_check
      _
    $region71: #{encoder_decoder_forward.1} parent=1 // pred_check_branch
      %1174 = sbr.rel (0) target = $region73
    $region72: #{encoder_decoder_forward.1} parent=1 // pred_region
      %1176 = vsyncadd [#allocation11], 0
      %s1178 = sshll.u32 [#allocation10], 4
      %s1179 = int_to_ptr.vmem [resolvable:$true] %s1178
      %s1180 = sshll.u32 %s14, 4
      %s1181 = int_to_ptr.hbm [resolvable:$true] %s1180
      %1183 = dma.vmem_to_hbm [thread:$0]  %s1179, 128, %s1181, [#allocation11]
    $region73: #{encoder_decoder_forward.1} parent=1 // pred_fallthru
      _
    // Predicated region
    $region74: #{encoder_decoder_forward.1} parent=1 // pred_check
      _
    $region75: #{encoder_decoder_forward.1} parent=1 // pred_check_branch
      %1185 = sbr.rel (0) target = $region77
    $region76: #{encoder_decoder_forward.1} parent=1 // pred_region
      %1187 = dma.done [#allocation5], 1024
    $region77: #{encoder_decoder_forward.1} parent=1 // pred_fallthru
      _
    // Predicated region
    $region78: #{encoder_decoder_forward.1} parent=1 // pred_check
      _
    $region79: #{encoder_decoder_forward.1} parent=1 // pred_check_branch
      %1189 = sbr.rel (0) target = $region81
    $region80: #{encoder_decoder_forward.1} parent=1 // pred_region
      %1191 = dma.done [#allocation11], 128
    $region81: #{encoder_decoder_forward.1} parent=1 // pred_fallthru
      _
    %1192 = vsyncpa [#allocation4], 1
    %1193 = vsyncpa [#allocation7], 1
    %1194 = vsyncpa [#allocation5], 1
    %1195 = vsyncpa [#allocation11], 1

</llo_original>
